<compile_context>
chip_gen: v7x
topology: tpu7x:2x2x1
jax: 0.10.0
libtpu: 0.0.40
codegen_flags: <defaults>
</compile_context>

<pallas_src>
import functools

import jax
import jax.numpy as jnp
import numpy as np
from jax import lax
from jax.experimental import pallas as pl
from jax.experimental.pallas import tpu as pltpu

# ----- module hyper-parameters (GradientProjection-style defaults) ----------
NUM_STEPS = 3       # num_steps
STEP_SIZE = 0.01    # step_size
DECAY = 0.1         # decay

_BIG = 1e30         # padded b entries (kept in f32): constraints never activate


def _round_up(v, m):
    return ((v + m - 1) // m) * m


def _vmem_capacity_bytes(default_bytes=64 * 1024 * 1024):
    """Physical VMEM of the local chip; conservative 64 MiB if unknown."""
    try:
        info = pltpu.get_tpu_info()
        cap = getattr(info, "vmem_capacity_bytes", None)
        if cap:
            return int(cap)
    except Exception:
        pass
    return default_bytes


def _solver_kernel(x_ref, a_ref, at_ref, g_ref, b_ref, o_ref, *,
                   num_steps, step_size, decay, m_true):
    f32 = jnp.float32
    x0 = x_ref[...]                      # (TB, Np) input dtype (no upcast)
    At = at_ref[...]                     # (Np, Mp) input dtype, pre-transposed
    G = g_ref[...]                       # (Mp, Mp) chain dtype (precomputed Gram)
    b = b_ref[...]                       # (1, Mp)  float32

    chain_dt = G.dtype

    # z0 = x0 @ A^T - b : operands in native dtype, f32 accumulation on MXU.
    z = jnp.dot(x0, At, preferred_element_type=f32) - b          # (TB, Mp) f32

    # Constraint-space iteration:
    #   pos_k   = 1[z_k > 0]
    #   S      += coef_k * pos_k                       (f32, exact given pos)
    #   z_{k+1} = z_k - coef_k * (pos_k @ G)           (chain-dtype MXU, f32 acc)
    # Final:  x = x0 - S @ A   (single projection back to feature space).
    S = jnp.zeros_like(z)
    d = 1.0
    for k in range(num_steps):
        coef = d * step_size / m_true       # trace-time Python scalar
        pos = z > 0.0
        S = S + jnp.where(pos, jnp.float32(coef), jnp.float32(0.0))
        if k + 1 < num_steps:
            ind = pos.astype(chain_dt)      # exact 0/1 in chain dtype
            z = z - jnp.float32(coef) * jnp.dot(ind, G,
                                                preferred_element_type=f32)
        d = d - decay * d

    step_x = jnp.dot(S.astype(a_ref.dtype), a_ref[...],
                     preferred_element_type=f32)
    o_ref[...] = (x0.astype(f32) - step_x).astype(o_ref.dtype)   # (TB, Np)


def iterative_solver(x, A, b, *, num_steps=NUM_STEPS, step_size=STEP_SIZE,
                     decay=DECAY, block_batch=None, chain_dtype=jnp.bfloat16):
    """Projected-gradient constraint correction; returns updated x."""
    B, N = x.shape
    M = A.shape[0]
    b = jnp.asarray(b).reshape(-1)

    # Lane-dense padding: last dims to multiples of 128.
    Np = _round_up(N, 128)
    Mp = _round_up(M, 128)

    # Per-generation defaults: big tiles + high VMEM limit on 128-MiB chips
    # (v5e/v6e), v7x-safe 256 / 48 MiB on 64-MiB chips.
    vmem_cap = _vmem_capacity_bytes()
    big_vmem = vmem_cap >= (100 * 1024 * 1024)
    if block_batch is None:
        block_batch = 512 if big_vmem else 256
    vmem_limit = (96 if big_vmem else 48) * 1024 * 1024

    # Batch tile: multiple of 128 (full MXU passes), capped so the grid keeps
    # >= 2 steps whenever the batch allows it (v7x megacore + pipeline overlap).
    tb_target = _round_up(max(int(block_batch), 1), 128)
    tb_cap = _round_up(pl.cdiv(max(B, 1), 2), 128)
    TB = max(128, min(tb_target, tb_cap))
    Bp = _round_up(B, TB)

    dt = x.dtype
    f32 = jnp.float32
    xp = jnp.zeros((Bp, Np), dt).at[:B, :N].set(x)
    Ap = jnp.zeros((Mp, Np), A.dtype).at[:M, :N].set(A)
    ATp = Ap.T                                       # (Np, Mp): no in-kernel transpose
    # b stays float32 so the +BIG padding can't overflow low-precision dtypes.
    bp = jnp.full((Mp,), _BIG, dtype=f32).at[:M].set(b.astype(f32)).reshape(1, Mp)
    # Grid-invariant Gram matrix, computed once in XLA at high precision.
    Apf = Ap.astype(f32)
    Gp = jnp.matmul(Apf, Apf.T,
                    precision=lax.Precision.HIGHEST).astype(chain_dtype)

    kernel = functools.partial(_solver_kernel, num_steps=num_steps,
                               step_size=step_size, decay=decay, m_true=M)

    def _call(single_buffer_invariants):
        def inv_spec(shape):
            # Grid-invariant operands: request 1-deep buffering to halve their
            # resident VMEM footprint (key on v7x's 64 MiB VMEM).
            if single_buffer_invariants:
                return pl.BlockSpec(shape, lambda i: tuple(0 for _ in shape),
                                    pipeline_mode=pl.Buffered(1))
            return pl.BlockSpec(shape, lambda i: tuple(0 for _ in shape))

        return pl.pallas_call(
            kernel,
            out_shape=jax.ShapeDtypeStruct((Bp, Np), dt),
            grid=(Bp // TB,),
            in_specs=[
                pl.BlockSpec((TB, Np), lambda i: (i, 0)),   # x: batch-tiled
                inv_spec((Mp, Np)),                         # A
                inv_spec((Np, Mp)),                         # A^T
                inv_spec((Mp, Mp)),                         # G = A A^T
                inv_spec((1, Mp)),                          # b (f32)
            ],
            out_specs=pl.BlockSpec((TB, Np), lambda i: (i, 0)),
            input_output_aliases={0: 0},                    # reuse padded x buffer
            compiler_params=pltpu.CompilerParams(
                dimension_semantics=("parallel",),
                vmem_limit_bytes=vmem_limit,
            ),
        )(xp, Ap, ATp, Gp, bp)

    try:
        out = _call(True)
    except Exception:
        # pipeline_mode / Buffered(1) not supported on this jax build: fall
        # back to default double-buffered invariants (correctness identical).
        out = _call(False)
    return out[:B, :N]


# ---------------------------- pure-JAX reference -----------------------------
def _reference(x, A, b, num_steps=NUM_STEPS, step_size=STEP_SIZE, decay=DECAY):
    def energy_sum(xx):
        z = jnp.matmul(xx, A.T, precision=lax.Precision.HIGHEST) - b[None, :]
        viol = jnp.maximum(z, 0.0)
        return jnp.sum(jnp.mean(jnp.abs(viol), axis=1))

    d = 1.0
    out = x
    for _ in range(num_steps):
        g = jax.grad(energy_sum)(out)    # autograd, matches torch.autograd.grad
        out = out - d * step_size * g
        d = d - decay * d
    return out


if __name__ == "__main__":
    key = jax.random.PRNGKey(0)
    kx, ka, kb = jax.random.split(key, 3)

    B, N, M = 128, 32, 16               # batch, features, number of constraints
    x = jax.random.normal(kx, (B, N), dtype=jnp.float32)
    A = jax.random.normal(ka, (M, N), dtype=jnp.float32) * 0.5
    b = jax.random.normal(kb, (M,), dtype=jnp.float32) * 0.1

    ref = _reference(x, A, b)

    # Exact-arithmetic path (f32 z-update chain) matches autograd reference.
    out_f32 = jax.block_until_ready(
        iterative_solver(x, A, b, chain_dtype=jnp.float32))
    np.testing.assert_allclose(np.asarray(out_f32), np.asarray(ref),
                               rtol=1e-5, atol=1e-5)

    # Default fast path (bf16 indicator@G chain, f32 accumulation).  Output is
    # bit-identical to the f32 chain unless a constraint sits within bf16
    # rounding of the activation threshold; tolerance covers such a flip.
    out = jax.block_until_ready(iterative_solver(x, A, b))
    np.testing.assert_allclose(np.asarray(out), np.asarray(ref),
                               rtol=1e-3, atol=3e-3)

    assert out.shape == x.shape and out.dtype == x.dtype
    print("KERNEL_OK")
</pallas_src>

<mosaic_0001>
module attributes {stable_mosaic.version = 11 : i64} {
  func.func @_solver_kernel(%arg0: i32, %arg1: memref<128x128xf32, #tpu.memory_space<vmem>>, %arg2: memref<128x128xf32, #tpu.memory_space<vmem>>, %arg3: memref<128x128xf32, #tpu.memory_space<vmem>>, %arg4: memref<128x128xf32, #tpu.memory_space<vmem>>, %arg5: memref<1x128xf32, #tpu.memory_space<vmem>>, %arg6: memref<128x128xf32, #tpu.memory_space<vmem>>) attributes {dimension_semantics = [#tpu.dimension_semantics<parallel>], iteration_bounds = array<i64: 1>, scalar_prefetch = 0 : i64, scratch_operands = 0 : i64, tpu.core_type = #tpu.core_type<tc>, window_params = [{transform_indices = @transform_0, window_bounds = array<i64: 128, 128>}, {pipeline_mode = #tpu.pipeline_mode<synchronous>, transform_indices = @transform_1, window_bounds = array<i64: 128, 128>}, {pipeline_mode = #tpu.pipeline_mode<synchronous>, transform_indices = @transform_2, window_bounds = array<i64: 128, 128>}, {pipeline_mode = #tpu.pipeline_mode<synchronous>, transform_indices = @transform_3, window_bounds = array<i64: 128, 128>}, {pipeline_mode = #tpu.pipeline_mode<synchronous>, transform_indices = @transform_4, window_bounds = array<i64: 1, 128>}, {transform_indices = @transform_5, window_bounds = array<i64: 128, 128>}]} {
    %c0 = arith.constant 0 : index
    %c0_0 = arith.constant 0 : index
    %0 = vector.load %arg1[%c0, %c0_0] : memref<128x128xf32, #tpu.memory_space<vmem>>, vector<128x128xf32>
    %c0_1 = arith.constant 0 : index
    %c0_2 = arith.constant 0 : index
    %1 = vector.load %arg3[%c0_1, %c0_2] : memref<128x128xf32, #tpu.memory_space<vmem>>, vector<128x128xf32>
    %c0_3 = arith.constant 0 : index
    %c0_4 = arith.constant 0 : index
    %2 = vector.load %arg4[%c0_3, %c0_4] : memref<128x128xf32, #tpu.memory_space<vmem>>, vector<128x128xf32>
    %c0_5 = arith.constant 0 : index
    %c0_6 = arith.constant 0 : index
    %3 = vector.load %arg5[%c0_5, %c0_6] : memref<1x128xf32, #tpu.memory_space<vmem>>, vector<1x128xf32>
    %cst = arith.constant dense<0.000000e+00> : vector<128x128xf32>
    %4 = tpu.matmul %0, %1, %cst {dimension_numbers = #tpu.dot_dimension_numbers<[1], [0], [0], [1], [0, 0, 1, 1], [], []>} : vector<128x128xf32>, vector<128x128xf32>, vector<128x128xf32> -> vector<128x128xf32>
    %5 = vector.broadcast %3 : vector<1x128xf32> to vector<128x128xf32>
    %6 = arith.subf %4, %5 : vector<128x128xf32>
    %cst_7 = arith.constant 0.000000e+00 : f32
    %7 = vector.broadcast %cst_7 : f32 to vector<128x128xf32>
    %cst_8 = arith.constant 0.000000e+00 : f32
    %8 = vector.broadcast %cst_8 : f32 to vector<128x128xf32>
    %9 = arith.cmpf ogt, %6, %8 : vector<128x128xf32>
    %cst_9 = arith.constant 6.250000e-04 : f32
    %cst_10 = arith.constant 0.000000e+00 : f32
    %10 = vector.broadcast %cst_9 : f32 to vector<128x128xf32>
    %11 = vector.broadcast %cst_10 : f32 to vector<128x128xf32>
    %12 = arith.select %9, %10, %11 : vector<128x128xi1>, vector<128x128xf32>
    %13 = arith.addf %7, %12 : vector<128x128xf32>
    %14 = arith.extui %9 : vector<128x128xi1> to vector<128x128xi32>
    %15 = arith.sitofp %14 : vector<128x128xi32> to vector<128x128xf32>
    %cst_11 = arith.constant dense<0.000000e+00> : vector<128x128xf32>
    %16 = tpu.matmul %15, %2, %cst_11 {dimension_numbers = #tpu.dot_dimension_numbers<[1], [0], [0], [1], [0, 0, 1, 1], [], []>} : vector<128x128xf32>, vector<128x128xf32>, vector<128x128xf32> -> vector<128x128xf32>
    %cst_12 = arith.constant 6.250000e-04 : f32
    %17 = vector.broadcast %cst_12 : f32 to vector<128x128xf32>
    %18 = arith.mulf %17, %16 : vector<128x128xf32>
    %19 = arith.subf %6, %18 : vector<128x128xf32>
    %cst_13 = arith.constant 0.000000e+00 : f32
    %20 = vector.broadcast %cst_13 : f32 to vector<128x128xf32>
    %21 = arith.cmpf ogt, %19, %20 : vector<128x128xf32>
    %cst_14 = arith.constant 5.625000e-04 : f32
    %cst_15 = arith.constant 0.000000e+00 : f32
    %22 = vector.broadcast %cst_14 : f32 to vector<128x128xf32>
    %23 = vector.broadcast %cst_15 : f32 to vector<128x128xf32>
    %24 = arith.select %21, %22, %23 : vector<128x128xi1>, vector<128x128xf32>
    %25 = arith.addf %13, %24 : vector<128x128xf32>
    %26 = arith.extui %21 : vector<128x128xi1> to vector<128x128xi32>
    %27 = arith.sitofp %26 : vector<128x128xi32> to vector<128x128xf32>
    %cst_16 = arith.constant dense<0.000000e+00> : vector<128x128xf32>
    %28 = tpu.matmul %27, %2, %cst_16 {dimension_numbers = #tpu.dot_dimension_numbers<[1], [0], [0], [1], [0, 0, 1, 1], [], []>} : vector<128x128xf32>, vector<128x128xf32>, vector<128x128xf32> -> vector<128x128xf32>
    %cst_17 = arith.constant 5.625000e-04 : f32
    %29 = vector.broadcast %cst_17 : f32 to vector<128x128xf32>
    %30 = arith.mulf %29, %28 : vector<128x128xf32>
    %31 = arith.subf %19, %30 : vector<128x128xf32>
    %cst_18 = arith.constant 0.000000e+00 : f32
    %32 = vector.broadcast %cst_18 : f32 to vector<128x128xf32>
    %33 = arith.cmpf ogt, %31, %32 : vector<128x128xf32>
    %cst_19 = arith.constant 5.062500e-04 : f32
    %cst_20 = arith.constant 0.000000e+00 : f32
    %34 = vector.broadcast %cst_19 : f32 to vector<128x128xf32>
    %35 = vector.broadcast %cst_20 : f32 to vector<128x128xf32>
    %36 = arith.select %33, %34, %35 : vector<128x128xi1>, vector<128x128xf32>
    %37 = arith.addf %25, %36 : vector<128x128xf32>
    %c0_21 = arith.constant 0 : index
    %c0_22 = arith.constant 0 : index
    %38 = vector.load %arg2[%c0_21, %c0_22] : memref<128x128xf32, #tpu.memory_space<vmem>>, vector<128x128xf32>
    %cst_23 = arith.constant dense<0.000000e+00> : vector<128x128xf32>
    %39 = tpu.matmul %37, %38, %cst_23 {dimension_numbers = #tpu.dot_dimension_numbers<[1], [0], [0], [1], [0, 0, 1, 1], [], []>} : vector<128x128xf32>, vector<128x128xf32>, vector<128x128xf32> -> vector<128x128xf32>
    %40 = arith.subf %0, %39 : vector<128x128xf32>
    %c0_24 = arith.constant 0 : index
    %c0_25 = arith.constant 0 : index
    %41 = vector.load %arg6[%c0_24, %c0_25] : memref<128x128xf32, #tpu.memory_space<vmem>>, vector<128x128xf32>
    tpu.vector_store %arg6[%c0_24, %c0_25], %40 {strides = array<i32>} : memref<128x128xf32, #tpu.memory_space<vmem>>, vector<128x128xf32>,
    return
  }
  func.func @transform_0(%arg0: i32) -> (i32, i32) {
    %c0_i32 = arith.constant 0 : i32
    %c0_i32_0 = arith.constant 0 : i32
    return %arg0, %c0_i32 : i32, i32
  }
  func.func @transform_1(%arg0: i32) -> (i32, i32) {
    %c0_i32 = arith.constant 0 : i32
    %c0_i32_0 = arith.constant 0 : i32
    %c0_i32_1 = arith.constant 0 : i32
    return %c0_i32, %c0_i32_0 : i32, i32
  }
  func.func @transform_2(%arg0: i32) -> (i32, i32) {
    %c0_i32 = arith.constant 0 : i32
    %c0_i32_0 = arith.constant 0 : i32
    %c0_i32_1 = arith.constant 0 : i32
    return %c0_i32, %c0_i32_0 : i32, i32
  }
  func.func @transform_3(%arg0: i32) -> (i32, i32) {
    %c0_i32 = arith.constant 0 : i32
    %c0_i32_0 = arith.constant 0 : i32
    %c0_i32_1 = arith.constant 0 : i32
    return %c0_i32, %c0_i32_0 : i32, i32
  }
  func.func @transform_4(%arg0: i32) -> (i32, i32) {
    %c0_i32 = arith.constant 0 : i32
    %c0_i32_0 = arith.constant 0 : i32
    %c0_i32_1 = arith.constant 0 : i32
    return %c0_i32, %c0_i32_0 : i32, i32
  }
  func.func @transform_5(%arg0: i32) -> (i32, i32) {
    %c0_i32 = arith.constant 0 : i32
    %c0_i32_0 = arith.constant 0 : i32
    return %arg0, %c0_i32 : i32, i32
  }
}

module attributes {stable_mosaic.version = 11 : i64} {
  func.func @_solver_kernel(%arg0: i32, %arg1: memref<128x128xf32, #tpu.memory_space<vmem>>, %arg2: memref<128x128xf32, #tpu.memory_space<vmem>>, %arg3: memref<128x128xf32, #tpu.memory_space<vmem>>, %arg4: memref<128x128xf32, #tpu.memory_space<vmem>>, %arg5: memref<1x128xf32, #tpu.memory_space<vmem>>, %arg6: memref<128x128xf32, #tpu.memory_space<vmem>>) attributes {dimension_semantics = [#tpu.dimension_semantics<parallel>], iteration_bounds = array<i64: 1>, scalar_prefetch = 0 : i64, scratch_operands = 0 : i64, tpu.core_type = #tpu.core_type<tc>, window_params = [{transform_indices = @transform_0, window_bounds = array<i64: 128, 128>}, {pipeline_mode = #tpu.pipeline_mode<synchronous>, transform_indices = @transform_1, window_bounds = array<i64: 128, 128>}, {pipeline_mode = #tpu.pipeline_mode<synchronous>, transform_indices = @transform_2, window_bounds = array<i64: 128, 128>}, {pipeline_mode = #tpu.pipeline_mode<synchronous>, transform_indices = @transform_3, window_bounds = array<i64: 128, 128>}, {pipeline_mode = #tpu.pipeline_mode<synchronous>, transform_indices = @transform_4, window_bounds = array<i64: 1, 128>}, {transform_indices = @transform_5, window_bounds = array<i64: 128, 128>}]} {
    %c0 = arith.constant 0 : index
    %c0_0 = arith.constant 0 : index
    %0 = vector.load %arg1[%c0, %c0_0] : memref<128x128xf32, #tpu.memory_space<vmem>>, vector<128x128xf32>
    %c0_1 = arith.constant 0 : index
    %c0_2 = arith.constant 0 : index
    %1 = vector.load %arg3[%c0_1, %c0_2] : memref<128x128xf32, #tpu.memory_space<vmem>>, vector<128x128xf32>
    %c0_3 = arith.constant 0 : index
    %c0_4 = arith.constant 0 : index
    %2 = vector.load %arg4[%c0_3, %c0_4] : memref<128x128xf32, #tpu.memory_space<vmem>>, vector<128x128xf32>
    %c0_5 = arith.constant 0 : index
    %c0_6 = arith.constant 0 : index
    %3 = vector.load %arg5[%c0_5, %c0_6] : memref<1x128xf32, #tpu.memory_space<vmem>>, vector<1x128xf32>
    %cst = arith.constant dense<0.000000e+00> : vector<128x128xf32>
    %4 = tpu.matmul %0, %1, %cst {dimension_numbers = #tpu.dot_dimension_numbers<[1], [0], [0], [1], [0, 0, 1, 1], [], []>} : vector<128x128xf32>, vector<128x128xf32>, vector<128x128xf32> -> vector<128x128xf32>
    %5 = vector.broadcast %3 : vector<1x128xf32> to vector<128x128xf32>
    %6 = arith.subf %4, %5 : vector<128x128xf32>
    %cst_7 = arith.constant 0.000000e+00 : f32
    %7 = vector.broadcast %cst_7 : f32 to vector<128x128xf32>
    %cst_8 = arith.constant 0.000000e+00 : f32
    %8 = vector.broadcast %cst_8 : f32 to vector<128x128xf32>
    %9 = arith.cmpf ogt, %6, %8 : vector<128x128xf32>
    %cst_9 = arith.constant 6.250000e-04 : f32
    %cst_10 = arith.constant 0.000000e+00 : f32
    %10 = vector.broadcast %cst_9 : f32 to vector<128x128xf32>
    %11 = vector.broadcast %cst_10 : f32 to vector<128x128xf32>
    %12 = arith.select %9, %10, %11 : vector<128x128xi1>, vector<128x128xf32>
    %13 = arith.addf %7, %12 : vector<128x128xf32>
    %14 = arith.extui %9 : vector<128x128xi1> to vector<128x128xi32>
    %15 = arith.sitofp %14 : vector<128x128xi32> to vector<128x128xf32>
    %cst_11 = arith.constant dense<0.000000e+00> : vector<128x128xf32>
    %16 = tpu.matmul %15, %2, %cst_11 {dimension_numbers = #tpu.dot_dimension_numbers<[1], [0], [0], [1], [0, 0, 1, 1], [], []>} : vector<128x128xf32>, vector<128x128xf32>, vector<128x128xf32> -> vector<128x128xf32>
    %cst_12 = arith.constant 6.250000e-04 : f32
    %17 = vector.broadcast %cst_12 : f32 to vector<128x128xf32>
    %18 = arith.mulf %17, %16 : vector<128x128xf32>
    %19 = arith.subf %6, %18 : vector<128x128xf32>
    %cst_13 = arith.constant 0.000000e+00 : f32
    %20 = vector.broadcast %cst_13 : f32 to vector<128x128xf32>
    %21 = arith.cmpf ogt, %19, %20 : vector<128x128xf32>
    %cst_14 = arith.constant 5.625000e-04 : f32
    %cst_15 = arith.constant 0.000000e+00 : f32
    %22 = vector.broadcast %cst_14 : f32 to vector<128x128xf32>
    %23 = vector.broadcast %cst_15 : f32 to vector<128x128xf32>
    %24 = arith.select %21, %22, %23 : vector<128x128xi1>, vector<128x128xf32>
    %25 = arith.addf %13, %24 : vector<128x128xf32>
    %26 = arith.extui %21 : vector<128x128xi1> to vector<128x128xi32>
    %27 = arith.sitofp %26 : vector<128x128xi32> to vector<128x128xf32>
    %cst_16 = arith.constant dense<0.000000e+00> : vector<128x128xf32>
    %28 = tpu.matmul %27, %2, %cst_16 {dimension_numbers = #tpu.dot_dimension_numbers<[1], [0], [0], [1], [0, 0, 1, 1], [], []>} : vector<128x128xf32>, vector<128x128xf32>, vector<128x128xf32> -> vector<128x128xf32>
    %cst_17 = arith.constant 5.625000e-04 : f32
    %29 = vector.broadcast %cst_17 : f32 to vector<128x128xf32>
    %30 = arith.mulf %29, %28 : vector<128x128xf32>
    %31 = arith.subf %19, %30 : vector<128x128xf32>
    %cst_18 = arith.constant 0.000000e+00 : f32
    %32 = vector.broadcast %cst_18 : f32 to vector<128x128xf32>
    %33 = arith.cmpf ogt, %31, %32 : vector<128x128xf32>
    %cst_19 = arith.constant 5.062500e-04 : f32
    %cst_20 = arith.constant 0.000000e+00 : f32
    %34 = vector.broadcast %cst_19 : f32 to vector<128x128xf32>
    %35 = vector.broadcast %cst_20 : f32 to vector<128x128xf32>
    %36 = arith.select %33, %34, %35 : vector<128x128xi1>, vector<128x128xf32>
    %37 = arith.addf %25, %36 : vector<128x128xf32>
    %c0_21 = arith.constant 0 : index
    %c0_22 = arith.constant 0 : index
    %38 = vector.load %arg2[%c0_21, %c0_22] : memref<128x128xf32, #tpu.memory_space<vmem>>, vector<128x128xf32>
    %cst_23 = arith.constant dense<0.000000e+00> : vector<128x128xf32>
    %39 = tpu.matmul %37, %38, %cst_23 {dimension_numbers = #tpu.dot_dimension_numbers<[1], [0], [0], [1], [0, 0, 1, 1], [], []>} : vector<128x128xf32>, vector<128x128xf32>, vector<128x128xf32> -> vector<128x128xf32>
    %40 = arith.subf %0, %39 : vector<128x128xf32>
    %c0_24 = arith.constant 0 : index
    %c0_25 = arith.constant 0 : index
    %41 = vector.load %arg6[%c0_24, %c0_25] : memref<128x128xf32, #tpu.memory_space<vmem>>, vector<128x128xf32>
    tpu.vector_store %arg6[%c0_24, %c0_25], %40 {strides = array<i32>} : memref<128x128xf32, #tpu.memory_space<vmem>>, vector<128x128xf32>,
    return
  }
  func.func @transform_0(%arg0: i32) -> (i32, i32) {
    %c0_i32 = arith.constant 0 : i32
    %c0_i32_0 = arith.constant 0 : i32
    return %arg0, %c0_i32 : i32, i32
  }
  func.func @transform_1(%arg0: i32) -> (i32, i32) {
    %c0_i32 = arith.constant 0 : i32
    %c0_i32_0 = arith.constant 0 : i32
    %c0_i32_1 = arith.constant 0 : i32
    return %c0_i32, %c0_i32_0 : i32, i32
  }
  func.func @transform_2(%arg0: i32) -> (i32, i32) {
    %c0_i32 = arith.constant 0 : i32
    %c0_i32_0 = arith.constant 0 : i32
    %c0_i32_1 = arith.constant 0 : i32
    return %c0_i32, %c0_i32_0 : i32, i32
  }
  func.func @transform_3(%arg0: i32) -> (i32, i32) {
    %c0_i32 = arith.constant 0 : i32
    %c0_i32_0 = arith.constant 0 : i32
    %c0_i32_1 = arith.constant 0 : i32
    return %c0_i32, %c0_i32_0 : i32, i32
  }
  func.func @transform_4(%arg0: i32) -> (i32, i32) {
    %c0_i32 = arith.constant 0 : i32
    %c0_i32_0 = arith.constant 0 : i32
    %c0_i32_1 = arith.constant 0 : i32
    return %c0_i32, %c0_i32_0 : i32, i32
  }
  func.func @transform_5(%arg0: i32) -> (i32, i32) {
    %c0_i32 = arith.constant 0 : i32
    %c0_i32_0 = arith.constant 0 : i32
    return %arg0, %c0_i32 : i32, i32
  }
}

</mosaic_0001>

<llo_original>
// kernel: tpu_custom_call.1
$region0: #{tpu_custom_call.1}
  #allocation0 [shape = 'u32[]', space=smem, size = 0x4, offset = 0x4, fixed_abs, tag = 'smem constant byte address 0x4 - core index']
  #allocation1 [shape = 'u32[144,128]{1,0:T(1,128)}', space=vmem, size = 0x12000, scoped, tag = 'internal scratch']
  %s0 = inlined_call_operand.hbm [shape: f32[128,128], index: 0, kind: input, shape index: {}, may-alias: {0,5}]
  %s1 = inlined_call_operand.vmem [shape: f32[128,128], index: 1, kind: input, shape index: {}]
  %s2 = inlined_call_operand.vmem [shape: f32[128,128], index: 2, kind: input, shape index: {}]
  %s3 = inlined_call_operand.hbm [shape: f32[128,128], index: 3, kind: input, shape index: {}]
  %s4 = inlined_call_operand.vmem [shape: f32[1,128], index: 4, kind: input, shape index: {}]
  %s5 = inlined_call_operand.hbm [shape: f32[128,128], index: 5, kind: output, shape index: {}, may-alias: {0,5}]
  %s6 = sld [smem:[#allocation0]]
  $region38: #{tpu_custom_call.1} parent=0
    _
  %s8 = ssub.s32 1, %s6
  %s9 = scalar_select 0, %s8, %s6
  $region1: #{tpu_custom_call.1} parent=0
    #allocation2 [shape = 'u8[65536]{0}', space=vmem, size = 0x10000, scoped, tag = 'input window, operand 0, single buffered']
    #allocation3 [shape = 's32[1]{0}', space=sflag, size = 0x4, scoped, tag = 'scoped memory for tpu_custom_call.1']
    #allocation4 [shape = 's32[1]{0}', space=sflag, size = 0x4, scoped, tag = 'scoped memory for tpu_custom_call.1']
    #allocation5 [shape = 'u8[65536]{0}', space=vmem, size = 0x10000, scoped, tag = 'input window, operand 3, single buffered']
    #allocation6 [shape = 's32[1]{0}', space=sflag, size = 0x4, scoped, tag = 'scoped memory for tpu_custom_call.1']
    #allocation7 [shape = 'u8[65536]{0}', space=vmem, size = 0x10000, scoped, tag = 'output window, operand 0, single buffered']
    %10 = vsyncpa [#allocation3], 0
    %11 = vsyncpa [#allocation6], 0
    %12 = vsyncpa [#allocation4], 0
    // Predicated region
    $region2: #{tpu_custom_call.1} parent=1 // pred_check
      _
    $region3: #{tpu_custom_call.1} parent=1 // pred_check_branch
      %14 = sbr.rel (0) target = $region5
    $region4: #{tpu_custom_call.1} parent=1 // pred_region
      %s16 = ssub.s32 2048, 2048
      %17 = vsyncadd [#allocation3], %s16
      %s18 = sshll.u32 [#allocation2], 4
      %s19 = int_to_ptr.vmem [resolvable:$true] %s18
      %24 = dma.hbm_to_vmem [thread:$0]  %s0, 2048, %s19, [#allocation3], 128, 128, 8
    $region5: #{tpu_custom_call.1} parent=1 // pred_fallthru
      _
    // Predicated region
    $region6: #{tpu_custom_call.1} parent=1 // pred_check
      _
    $region7: #{tpu_custom_call.1} parent=1 // pred_check_branch
      %26 = sbr.rel (0) target = $region9
    $region8: #{tpu_custom_call.1} parent=1 // pred_region
      _
    $region9: #{tpu_custom_call.1} parent=1 // pred_fallthru
      _
    // Predicated region
    $region10: #{tpu_custom_call.1} parent=1 // pred_check
      _
    $region11: #{tpu_custom_call.1} parent=1 // pred_check_branch
      %28 = sbr.rel (0) target = $region13
    $region12: #{tpu_custom_call.1} parent=1 // pred_region
      _
    $region13: #{tpu_custom_call.1} parent=1 // pred_fallthru
      _
    // Predicated region
    $region14: #{tpu_custom_call.1} parent=1 // pred_check
      _
    $region15: #{tpu_custom_call.1} parent=1 // pred_check_branch
      %30 = sbr.rel (0) target = $region17
    $region16: #{tpu_custom_call.1} parent=1 // pred_region
      %s32 = ssub.s32 2048, 2048
      %33 = vsyncadd [#allocation6], %s32
      %s34 = sshll.u32 [#allocation5], 4
      %s35 = int_to_ptr.vmem [resolvable:$true] %s34
      %40 = dma.hbm_to_vmem [thread:$0]  %s3, 2048, %s35, [#allocation6], 128, 128, 8
    $region17: #{tpu_custom_call.1} parent=1 // pred_fallthru
      _
    // Predicated region
    $region18: #{tpu_custom_call.1} parent=1 // pred_check
      _
    $region19: #{tpu_custom_call.1} parent=1 // pred_check_branch
      %42 = sbr.rel (0) target = $region21
    $region20: #{tpu_custom_call.1} parent=1 // pred_region
      _
    $region21: #{tpu_custom_call.1} parent=1 // pred_fallthru
      _
    // Predicated region
    $region22: #{tpu_custom_call.1} parent=1 // pred_check
      _
    $region23: #{tpu_custom_call.1} parent=1 // pred_check_branch
      %44 = sbr.rel (0) target = $region25
    $region24: #{tpu_custom_call.1} parent=1 // pred_region
      %45 = dma.done [#allocation3], 2048
    $region25: #{tpu_custom_call.1} parent=1 // pred_fallthru
      _
    // Predicated region
    $region26: #{tpu_custom_call.1} parent=1 // pred_check
      _
    $region27: #{tpu_custom_call.1} parent=1 // pred_check_branch
      %47 = sbr.rel (0) target = $region29
    $region28: #{tpu_custom_call.1} parent=1 // pred_region
      %48 = dma.done [#allocation6], 2048
    $region29: #{tpu_custom_call.1} parent=1 // pred_fallthru
      _
    %v49 = vld [vmem:[#allocation2] sm:$0xff]
    %v50 = vld [vmem:[#allocation2 + $0x8] sm:$0xff]
    %v51 = vld [vmem:[#allocation2 + $0x10] sm:$0xff]
    %v52 = vld [vmem:[#allocation2 + $0x18] sm:$0xff]
    %v53 = vld [vmem:[#allocation2 + $0x20] sm:$0xff]
    %v54 = vld [vmem:[#allocation2 + $0x28] sm:$0xff]
    %v55 = vld [vmem:[#allocation2 + $0x30] sm:$0xff]
    %v56 = vld [vmem:[#allocation2 + $0x38] sm:$0xff]
    %v57 = vld [vmem:[#allocation2 + $0x40] sm:$0xff]
    %v58 = vld [vmem:[#allocation2 + $0x48] sm:$0xff]
    %v59 = vld [vmem:[#allocation2 + $0x50] sm:$0xff]
    %v60 = vld [vmem:[#allocation2 + $0x58] sm:$0xff]
    %v61 = vld [vmem:[#allocation2 + $0x60] sm:$0xff]
    %v62 = vld [vmem:[#allocation2 + $0x68] sm:$0xff]
    %v63 = vld [vmem:[#allocation2 + $0x70] sm:$0xff]
    %v64 = vld [vmem:[#allocation2 + $0x78] sm:$0xff]
    %v65 = vld [vmem:[%s2] sm:$0xff]
    %v66 = vld [vmem:[%s2 + $0x8] sm:$0xff]
    %v67 = vld [vmem:[%s2 + $0x10] sm:$0xff]
    %v68 = vld [vmem:[%s2 + $0x18] sm:$0xff]
    %v69 = vld [vmem:[%s2 + $0x20] sm:$0xff]
    %v70 = vld [vmem:[%s2 + $0x28] sm:$0xff]
    %v71 = vld [vmem:[%s2 + $0x30] sm:$0xff]
    %v72 = vld [vmem:[%s2 + $0x38] sm:$0xff]
    %v73 = vld [vmem:[%s2 + $0x40] sm:$0xff]
    %v74 = vld [vmem:[%s2 + $0x48] sm:$0xff]
    %v75 = vld [vmem:[%s2 + $0x50] sm:$0xff]
    %v76 = vld [vmem:[%s2 + $0x58] sm:$0xff]
    %v77 = vld [vmem:[%s2 + $0x60] sm:$0xff]
    %v78 = vld [vmem:[%s2 + $0x68] sm:$0xff]
    %v79 = vld [vmem:[%s2 + $0x70] sm:$0xff]
    %v80 = vld [vmem:[%s2 + $0x78] sm:$0xff]
    %v81 = vld [vmem:[#allocation5] sm:$0xff]
    %v82 = vld [vmem:[#allocation5 + $0x8] sm:$0xff]
    %v83 = vld [vmem:[#allocation5 + $0x10] sm:$0xff]
    %v84 = vld [vmem:[#allocation5 + $0x18] sm:$0xff]
    %v85 = vld [vmem:[#allocation5 + $0x20] sm:$0xff]
    %v86 = vld [vmem:[#allocation5 + $0x28] sm:$0xff]
    %v87 = vld [vmem:[#allocation5 + $0x30] sm:$0xff]
    %v88 = vld [vmem:[#allocation5 + $0x38] sm:$0xff]
    %v89 = vld [vmem:[#allocation5 + $0x40] sm:$0xff]
    %v90 = vld [vmem:[#allocation5 + $0x48] sm:$0xff]
    %v91 = vld [vmem:[#allocation5 + $0x50] sm:$0xff]
    %v92 = vld [vmem:[#allocation5 + $0x58] sm:$0xff]
    %v93 = vld [vmem:[#allocation5 + $0x60] sm:$0xff]
    %v94 = vld [vmem:[#allocation5 + $0x68] sm:$0xff]
    %v95 = vld [vmem:[#allocation5 + $0x70] sm:$0xff]
    %v96 = vld [vmem:[#allocation5 + $0x78] sm:$0xff]
    %v97 = vld [vmem:[%s4] sm:$0x1]
    %98 = vmatprep.subr.mxu0 0.0
    %99 = vmatpush1.msra.mxu0 %v65
    %100 = vmatprep.subr.mxu0 0.0
    %101 = vmatpush1.msra.mxu0 %v66
    %102 = vmatprep.subr.mxu0 0.0
    %103 = vmatpush1.msra.mxu0 %v67
    %104 = vmatprep.subr.mxu0 0.0
    %105 = vmatpush1.msra.mxu0 %v68
    %106 = vmatprep.subr.mxu0 0.0
    %107 = vmatpush1.msra.mxu0 %v69
    %108 = vmatprep.subr.mxu0 0.0
    %109 = vmatpush1.msra.mxu0 %v70
    %110 = vmatprep.subr.mxu0 0.0
    %111 = vmatpush1.msra.mxu0 %v71
    %112 = vmatprep.subr.mxu0 0.0
    %113 = vmatpush1.msra.mxu0 %v72
    %114 = vmatprep.subr.mxu0 0.0
    %115 = vmatpush1.msra.mxu0 %v73
    %116 = vmatprep.subr.mxu0 0.0
    %117 = vmatpush1.msra.mxu0 %v74
    %118 = vmatprep.subr.mxu0 0.0
    %119 = vmatpush1.msra.mxu0 %v75
    %120 = vmatprep.subr.mxu0 0.0
    %121 = vmatpush1.msra.mxu0 %v76
    %122 = vmatprep.subr.mxu0 0.0
    %123 = vmatpush1.msra.mxu0 %v77
    %124 = vmatprep.subr.mxu0 0.0
    %125 = vmatpush1.msra.mxu0 %v78
    %126 = vmatprep.subr.mxu0 0.0
    %127 = vmatpush1.msra.mxu0 %v79
    %128 = vmatprep.subr.mxu0 0.0
    %129 = vmatpush1.msra.mxu0 %v80
    %130 = vmatprep.subr.mxu0 0.0
    %131 = vmatpush1.msra.mxu0 0.0
    %132 = vmatprep.subr.mxu0 0.0
    %133 = vmatpush1.msra.mxu0 0.0
    %134 = vmatprep.subr.mxu0 0.0
    %135 = vmatpush1.msra.mxu0 0.0
    %136 = vmatprep.subr.mxu0 0.0
    %137 = vmatpush1.msra.mxu0 0.0
    %138 = vmatprep.subr.mxu0 0.0
    %139 = vmatpush1.msra.mxu0 0.0
    %140 = vmatprep.subr.mxu0 0.0
    %141 = vmatpush1.msra.mxu0 0.0
    %142 = vmatprep.subr.mxu0 0.0
    %143 = vmatpush1.msra.mxu0 0.0
    %144 = vmatprep.subr.mxu0 0.0
    %145 = vmatpush1.msra.mxu0 0.0
    %146 = vmatprep.subr.mxu0 0.0
    %147 = vmatpush1.msra.mxu0 0.0
    %148 = vmatprep.subr.mxu0 0.0
    %149 = vmatpush1.msra.mxu0 0.0
    %150 = vmatprep.subr.mxu0 0.0
    %151 = vmatpush1.msra.mxu0 0.0
    %152 = vmatprep.subr.mxu0 0.0
    %153 = vmatpush1.msra.mxu0 0.0
    %154 = vmatprep.subr.mxu0 0.0
    %155 = vmatpush1.msra.mxu0 0.0
    %156 = vmatprep.subr.mxu0 0.0
    %157 = vmatpush1.msra.mxu0 0.0
    %158 = vmatprep.subr.mxu0 0.0
    %159 = vmatpush1.msra.mxu0 0.0
    %160 = vmatprep.subr.mxu0 0.0
    %161 = vmatpush1.msra.mxu0 0.0
    %162 = vmatprep.mubr.f32.mxu0 0.0
    %163 = vmatmul.mubr.f32.gmra.mrb[0].mxu0 %v49
    %v164 = vpop.f32.mrb[0].mxu0
    %v165 = vadd.f32 0.0, %v164
    %v166 = vpop.f32.mrb[0].mxu0
    %167 = vmatprep.mubr.f32.mxu0 0.0
    %168 = vmatmul.mubr.f32.gmra.mrb[0].mxu0 %v50
    %v169 = vpop.f32.mrb[0].mxu0
    %v170 = vadd.f32 0.0, %v169
    %v171 = vpop.f32.mrb[0].mxu0
    %172 = vmatprep.mubr.f32.mxu0 0.0
    %173 = vmatmul.mubr.f32.gmra.mrb[0].mxu0 %v51
    %v174 = vpop.f32.mrb[0].mxu0
    %v175 = vadd.f32 0.0, %v174
    %v176 = vpop.f32.mrb[0].mxu0
    %177 = vmatprep.mubr.f32.mxu0 0.0
    %178 = vmatmul.mubr.f32.gmra.mrb[0].mxu0 %v52
    %v179 = vpop.f32.mrb[0].mxu0
    %v180 = vadd.f32 0.0, %v179
    %v181 = vpop.f32.mrb[0].mxu0
    %182 = vmatprep.mubr.f32.mxu0 0.0
    %183 = vmatmul.mubr.f32.gmra.mrb[0].mxu0 %v53
    %v184 = vpop.f32.mrb[0].mxu0
    %v185 = vadd.f32 0.0, %v184
    %v186 = vpop.f32.mrb[0].mxu0
    %187 = vmatprep.mubr.f32.mxu0 0.0
    %188 = vmatmul.mubr.f32.gmra.mrb[0].mxu0 %v54
    %v189 = vpop.f32.mrb[0].mxu0
    %v190 = vadd.f32 0.0, %v189
    %v191 = vpop.f32.mrb[0].mxu0
    %192 = vmatprep.mubr.f32.mxu0 0.0
    %193 = vmatmul.mubr.f32.gmra.mrb[0].mxu0 %v55
    %v194 = vpop.f32.mrb[0].mxu0
    %v195 = vadd.f32 0.0, %v194
    %v196 = vpop.f32.mrb[0].mxu0
    %197 = vmatprep.mubr.f32.mxu0 0.0
    %198 = vmatmul.mubr.f32.gmra.mrb[0].mxu0 %v56
    %v199 = vpop.f32.mrb[0].mxu0
    %v200 = vadd.f32 0.0, %v199
    %v201 = vpop.f32.mrb[0].mxu0
    %202 = vmatprep.mubr.f32.mxu0 0.0
    %203 = vmatmul.mubr.f32.gmra.mrb[0].mxu0 %v57
    %v204 = vpop.f32.mrb[0].mxu0
    %v205 = vadd.f32 0.0, %v204
    %v206 = vpop.f32.mrb[0].mxu0
    %207 = vmatprep.mubr.f32.mxu0 0.0
    %208 = vmatmul.mubr.f32.gmra.mrb[0].mxu0 %v58
    %v209 = vpop.f32.mrb[0].mxu0
    %v210 = vadd.f32 0.0, %v209
    %v211 = vpop.f32.mrb[0].mxu0
    %212 = vmatprep.mubr.f32.mxu0 0.0
    %213 = vmatmul.mubr.f32.gmra.mrb[0].mxu0 %v59
    %v214 = vpop.f32.mrb[0].mxu0
    %v215 = vadd.f32 0.0, %v214
    %v216 = vpop.f32.mrb[0].mxu0
    %217 = vmatprep.mubr.f32.mxu0 0.0
    %218 = vmatmul.mubr.f32.gmra.mrb[0].mxu0 %v60
    %v219 = vpop.f32.mrb[0].mxu0
    %v220 = vadd.f32 0.0, %v219
    %v221 = vpop.f32.mrb[0].mxu0
    %222 = vmatprep.mubr.f32.mxu0 0.0
    %223 = vmatmul.mubr.f32.gmra.mrb[0].mxu0 %v61
    %v224 = vpop.f32.mrb[0].mxu0
    %v225 = vadd.f32 0.0, %v224
    %v226 = vpop.f32.mrb[0].mxu0
    %227 = vmatprep.mubr.f32.mxu0 0.0
    %228 = vmatmul.mubr.f32.gmra.mrb[0].mxu0 %v62
    %v229 = vpop.f32.mrb[0].mxu0
    %v230 = vadd.f32 0.0, %v229
    %v231 = vpop.f32.mrb[0].mxu0
    %232 = vmatprep.mubr.f32.mxu0 0.0
    %233 = vmatmul.mubr.f32.gmra.mrb[0].mxu0 %v63
    %v234 = vpop.f32.mrb[0].mxu0
    %v235 = vadd.f32 0.0, %v234
    %v236 = vpop.f32.mrb[0].mxu0
    %237 = vmatprep.mubr.f32.mxu0 0.0
    %238 = vmatmul.mubr.f32.gmra.mrb[0].mxu0 %v64
    %v239 = vpop.f32.mrb[0].mxu0
    %v240 = vadd.f32 0.0, %v239
    %v241 = vpop.f32.mrb[0].mxu0
    %242 = vdwg.mxu0
    %v244 = vlaneseq
    %v245 = vshrl.u32 %v244, 7
    %v246 = vsub.s32 0, %v245
    %v247 = vrot.slane %v97, %v246
    %v249 = vsub.f32 %v165, %v247
    %v250 = vsub.f32 %v170, %v247
    %v251 = vsub.f32 %v175, %v247
    %v252 = vsub.f32 %v180, %v247
    %v253 = vsub.f32 %v185, %v247
    %v254 = vsub.f32 %v190, %v247
    %v255 = vsub.f32 %v195, %v247
    %v256 = vsub.f32 %v200, %v247
    %v257 = vsub.f32 %v205, %v247
    %v258 = vsub.f32 %v210, %v247
    %v259 = vsub.f32 %v215, %v247
    %v260 = vsub.f32 %v220, %v247
    %v261 = vsub.f32 %v225, %v247
    %v262 = vsub.f32 %v230, %v247
    %v263 = vsub.f32 %v235, %v247
    %v264 = vsub.f32 %v240, %v247
    %vm265 = vcmp.gt.f32.partialorder %v249, 0.0
    %vm266 = vcmp.gt.f32.partialorder %v250, 0.0
    %vm267 = vcmp.gt.f32.partialorder %v251, 0.0
    %vm268 = vcmp.gt.f32.partialorder %v252, 0.0
    %vm269 = vcmp.gt.f32.partialorder %v253, 0.0
    %vm270 = vcmp.gt.f32.partialorder %v254, 0.0
    %vm271 = vcmp.gt.f32.partialorder %v255, 0.0
    %vm272 = vcmp.gt.f32.partialorder %v256, 0.0
    %vm273 = vcmp.gt.f32.partialorder %v257, 0.0
    %vm274 = vcmp.gt.f32.partialorder %v258, 0.0
    %vm275 = vcmp.gt.f32.partialorder %v259, 0.0
    %vm276 = vcmp.gt.f32.partialorder %v260, 0.0
    %vm277 = vcmp.gt.f32.partialorder %v261, 0.0
    %vm278 = vcmp.gt.f32.partialorder %v262, 0.0
    %vm279 = vcmp.gt.f32.partialorder %v263, 0.0
    %vm280 = vcmp.gt.f32.partialorder %v264, 0.0
    %v281 = vsel %vm265, 0.000625, 0.0
    %v282 = vsel %vm266, 0.000625, 0.0
    %v283 = vsel %vm267, 0.000625, 0.0
    %v284 = vsel %vm268, 0.000625, 0.0
    %v285 = vsel %vm269, 0.000625, 0.0
    %v286 = vsel %vm270, 0.000625, 0.0
    %v287 = vsel %vm271, 0.000625, 0.0
    %v288 = vsel %vm272, 0.000625, 0.0
    %v289 = vsel %vm273, 0.000625, 0.0
    %v290 = vsel %vm274, 0.000625, 0.0
    %v291 = vsel %vm275, 0.000625, 0.0
    %v292 = vsel %vm276, 0.000625, 0.0
    %v293 = vsel %vm277, 0.000625, 0.0
    %v294 = vsel %vm278, 0.000625, 0.0
    %v295 = vsel %vm279, 0.000625, 0.0
    %v296 = vsel %vm280, 0.000625, 0.0
    %v297 = vadd.f32 %v281, 0.0
    %v298 = vadd.f32 %v282, 0.0
    %v299 = vadd.f32 %v283, 0.0
    %v300 = vadd.f32 %v284, 0.0
    %v301 = vadd.f32 %v285, 0.0
    %v302 = vadd.f32 %v286, 0.0
    %v303 = vadd.f32 %v287, 0.0
    %v304 = vadd.f32 %v288, 0.0
    %v305 = vadd.f32 %v289, 0.0
    %v306 = vadd.f32 %v290, 0.0
    %v307 = vadd.f32 %v291, 0.0
    %v308 = vadd.f32 %v292, 0.0
    %v309 = vadd.f32 %v293, 0.0
    %v310 = vadd.f32 %v294, 0.0
    %v311 = vadd.f32 %v295, 0.0
    %v312 = vadd.f32 %v296, 0.0
    %v313 = vsel %vm265, 1, 0
    %v314 = vsel %vm266, 1, 0
    %v315 = vsel %vm267, 1, 0
    %v316 = vsel %vm268, 1, 0
    %v317 = vsel %vm269, 1, 0
    %v318 = vsel %vm270, 1, 0
    %v319 = vsel %vm271, 1, 0
    %v320 = vsel %vm272, 1, 0
    %v321 = vsel %vm273, 1, 0
    %v322 = vsel %vm274, 1, 0
    %v323 = vsel %vm275, 1, 0
    %v324 = vsel %vm276, 1, 0
    %v325 = vsel %vm277, 1, 0
    %v326 = vsel %vm278, 1, 0
    %v327 = vsel %vm279, 1, 0
    %v328 = vsel %vm280, 1, 0
    %v329 = vcvt.s32.f32 %v313
    %v330 = vcvt.s32.f32 %v314
    %v331 = vcvt.s32.f32 %v315
    %v332 = vcvt.s32.f32 %v316
    %v333 = vcvt.s32.f32 %v317
    %v334 = vcvt.s32.f32 %v318
    %v335 = vcvt.s32.f32 %v319
    %v336 = vcvt.s32.f32 %v320
    %v337 = vcvt.s32.f32 %v321
    %v338 = vcvt.s32.f32 %v322
    %v339 = vcvt.s32.f32 %v323
    %v340 = vcvt.s32.f32 %v324
    %v341 = vcvt.s32.f32 %v325
    %v342 = vcvt.s32.f32 %v326
    %v343 = vcvt.s32.f32 %v327
    %v344 = vcvt.s32.f32 %v328
    %345 = vmatprep.subr.mxu0 0.0
    %346 = vmatpush1.msra.mxu0 %v81
    %347 = vmatprep.subr.mxu0 0.0
    %348 = vmatpush1.msra.mxu0 %v82
    %349 = vmatprep.subr.mxu0 0.0
    %350 = vmatpush1.msra.mxu0 %v83
    %351 = vmatprep.subr.mxu0 0.0
    %352 = vmatpush1.msra.mxu0 %v84
    %353 = vmatprep.subr.mxu0 0.0
    %354 = vmatpush1.msra.mxu0 %v85
    %355 = vmatprep.subr.mxu0 0.0
    %356 = vmatpush1.msra.mxu0 %v86
    %357 = vmatprep.subr.mxu0 0.0
    %358 = vmatpush1.msra.mxu0 %v87
    %359 = vmatprep.subr.mxu0 0.0
    %360 = vmatpush1.msra.mxu0 %v88
    %361 = vmatprep.subr.mxu0 0.0
    %362 = vmatpush1.msra.mxu0 %v89
    %363 = vmatprep.subr.mxu0 0.0
    %364 = vmatpush1.msra.mxu0 %v90
    %365 = vmatprep.subr.mxu0 0.0
    %366 = vmatpush1.msra.mxu0 %v91
    %367 = vmatprep.subr.mxu0 0.0
    %368 = vmatpush1.msra.mxu0 %v92
    %369 = vmatprep.subr.mxu0 0.0
    %370 = vmatpush1.msra.mxu0 %v93
    %371 = vmatprep.subr.mxu0 0.0
    %372 = vmatpush1.msra.mxu0 %v94
    %373 = vmatprep.subr.mxu0 0.0
    %374 = vmatpush1.msra.mxu0 %v95
    %375 = vmatprep.subr.mxu0 0.0
    %376 = vmatpush1.msra.mxu0 %v96
    %377 = vmatprep.subr.mxu0 0.0
    %378 = vmatpush1.msra.mxu0 0.0
    %379 = vmatprep.subr.mxu0 0.0
    %380 = vmatpush1.msra.mxu0 0.0
    %381 = vmatprep.subr.mxu0 0.0
    %382 = vmatpush1.msra.mxu0 0.0
    %383 = vmatprep.subr.mxu0 0.0
    %384 = vmatpush1.msra.mxu0 0.0
    %385 = vmatprep.subr.mxu0 0.0
    %386 = vmatpush1.msra.mxu0 0.0
    %387 = vmatprep.subr.mxu0 0.0
    %388 = vmatpush1.msra.mxu0 0.0
    %389 = vmatprep.subr.mxu0 0.0
    %390 = vmatpush1.msra.mxu0 0.0
    %391 = vmatprep.subr.mxu0 0.0
    %392 = vmatpush1.msra.mxu0 0.0
    %393 = vmatprep.subr.mxu0 0.0
    %394 = vmatpush1.msra.mxu0 0.0
    %395 = vmatprep.subr.mxu0 0.0
    %396 = vmatpush1.msra.mxu0 0.0
    %397 = vmatprep.subr.mxu0 0.0
    %398 = vmatpush1.msra.mxu0 0.0
    %399 = vmatprep.subr.mxu0 0.0
    %400 = vmatpush1.msra.mxu0 0.0
    %401 = vmatprep.subr.mxu0 0.0
    %402 = vmatpush1.msra.mxu0 0.0
    %403 = vmatprep.subr.mxu0 0.0
    %404 = vmatpush1.msra.mxu0 0.0
    %405 = vmatprep.subr.mxu0 0.0
    %406 = vmatpush1.msra.mxu0 0.0
    %407 = vmatprep.subr.mxu0 0.0
    %408 = vmatpush1.msra.mxu0 0.0
    %409 = vmatprep.mubr.f32.mxu0 0.0
    %410 = vmatmul.mubr.f32.gmra.mrb[0].mxu0 %v329
    %v411 = vpop.f32.mrb[0].mxu0
    %v412 = vadd.f32 0.0, %v411
    %v413 = vpop.f32.mrb[0].mxu0
    %414 = vmatprep.mubr.f32.mxu0 0.0
    %415 = vmatmul.mubr.f32.gmra.mrb[0].mxu0 %v330
    %v416 = vpop.f32.mrb[0].mxu0
    %v417 = vadd.f32 0.0, %v416
    %v418 = vpop.f32.mrb[0].mxu0
    %419 = vmatprep.mubr.f32.mxu0 0.0
    %420 = vmatmul.mubr.f32.gmra.mrb[0].mxu0 %v331
    %v421 = vpop.f32.mrb[0].mxu0
    %v422 = vadd.f32 0.0, %v421
    %v423 = vpop.f32.mrb[0].mxu0
    %424 = vmatprep.mubr.f32.mxu0 0.0
    %425 = vmatmul.mubr.f32.gmra.mrb[0].mxu0 %v332
    %v426 = vpop.f32.mrb[0].mxu0
    %v427 = vadd.f32 0.0, %v426
    %v428 = vpop.f32.mrb[0].mxu0
    %429 = vmatprep.mubr.f32.mxu0 0.0
    %430 = vmatmul.mubr.f32.gmra.mrb[0].mxu0 %v333
    %v431 = vpop.f32.mrb[0].mxu0
    %v432 = vadd.f32 0.0, %v431
    %v433 = vpop.f32.mrb[0].mxu0
    %434 = vmatprep.mubr.f32.mxu0 0.0
    %435 = vmatmul.mubr.f32.gmra.mrb[0].mxu0 %v334
    %v436 = vpop.f32.mrb[0].mxu0
    %v437 = vadd.f32 0.0, %v436
    %v438 = vpop.f32.mrb[0].mxu0
    %439 = vmatprep.mubr.f32.mxu0 0.0
    %440 = vmatmul.mubr.f32.gmra.mrb[0].mxu0 %v335
    %v441 = vpop.f32.mrb[0].mxu0
    %v442 = vadd.f32 0.0, %v441
    %v443 = vpop.f32.mrb[0].mxu0
    %444 = vmatprep.mubr.f32.mxu0 0.0
    %445 = vmatmul.mubr.f32.gmra.mrb[0].mxu0 %v336
    %v446 = vpop.f32.mrb[0].mxu0
    %v447 = vadd.f32 0.0, %v446
    %v448 = vpop.f32.mrb[0].mxu0
    %449 = vmatprep.mubr.f32.mxu0 0.0
    %450 = vmatmul.mubr.f32.gmra.mrb[0].mxu0 %v337
    %v451 = vpop.f32.mrb[0].mxu0
    %v452 = vadd.f32 0.0, %v451
    %v453 = vpop.f32.mrb[0].mxu0
    %454 = vmatprep.mubr.f32.mxu0 0.0
    %455 = vmatmul.mubr.f32.gmra.mrb[0].mxu0 %v338
    %v456 = vpop.f32.mrb[0].mxu0
    %v457 = vadd.f32 0.0, %v456
    %v458 = vpop.f32.mrb[0].mxu0
    %459 = vmatprep.mubr.f32.mxu0 0.0
    %460 = vmatmul.mubr.f32.gmra.mrb[0].mxu0 %v339
    %v461 = vpop.f32.mrb[0].mxu0
    %v462 = vadd.f32 0.0, %v461
    %v463 = vpop.f32.mrb[0].mxu0
    %464 = vmatprep.mubr.f32.mxu0 0.0
    %465 = vmatmul.mubr.f32.gmra.mrb[0].mxu0 %v340
    %v466 = vpop.f32.mrb[0].mxu0
    %v467 = vadd.f32 0.0, %v466
    %v468 = vpop.f32.mrb[0].mxu0
    %469 = vmatprep.mubr.f32.mxu0 0.0
    %470 = vmatmul.mubr.f32.gmra.mrb[0].mxu0 %v341
    %v471 = vpop.f32.mrb[0].mxu0
    %v472 = vadd.f32 0.0, %v471
    %v473 = vpop.f32.mrb[0].mxu0
    %474 = vmatprep.mubr.f32.mxu0 0.0
    %475 = vmatmul.mubr.f32.gmra.mrb[0].mxu0 %v342
    %v476 = vpop.f32.mrb[0].mxu0
    %v477 = vadd.f32 0.0, %v476
    %v478 = vpop.f32.mrb[0].mxu0
    %479 = vmatprep.mubr.f32.mxu0 0.0
    %480 = vmatmul.mubr.f32.gmra.mrb[0].mxu0 %v343
    %v481 = vpop.f32.mrb[0].mxu0
    %v482 = vadd.f32 0.0, %v481
    %v483 = vpop.f32.mrb[0].mxu0
    %484 = vmatprep.mubr.f32.mxu0 0.0
    %485 = vmatmul.mubr.f32.gmra.mrb[0].mxu0 %v344
    %v486 = vpop.f32.mrb[0].mxu0
    %v487 = vadd.f32 0.0, %v486
    %v488 = vpop.f32.mrb[0].mxu0
    %489 = vdwg.mxu0
    %v490 = vmul.f32 %v412, 0.000625
    %v491 = vmul.f32 %v417, 0.000625
    %v492 = vmul.f32 %v422, 0.000625
    %v493 = vmul.f32 %v427, 0.000625
    %v494 = vmul.f32 %v432, 0.000625
    %v495 = vmul.f32 %v437, 0.000625
    %v496 = vmul.f32 %v442, 0.000625
    %v497 = vmul.f32 %v447, 0.000625
    %v498 = vmul.f32 %v452, 0.000625
    %v499 = vmul.f32 %v457, 0.000625
    %v500 = vmul.f32 %v462, 0.000625
    %v501 = vmul.f32 %v467, 0.000625
    %v502 = vmul.f32 %v472, 0.000625
    %v503 = vmul.f32 %v477, 0.000625
    %v504 = vmul.f32 %v482, 0.000625
    %v505 = vmul.f32 %v487, 0.000625
    %v506 = vsub.f32 %v249, %v490
    %v507 = vsub.f32 %v250, %v491
    %v508 = vsub.f32 %v251, %v492
    %v509 = vsub.f32 %v252, %v493
    %v510 = vsub.f32 %v253, %v494
    %v511 = vsub.f32 %v254, %v495
    %v512 = vsub.f32 %v255, %v496
    %v513 = vsub.f32 %v256, %v497
    %v514 = vsub.f32 %v257, %v498
    %v515 = vsub.f32 %v258, %v499
    %v516 = vsub.f32 %v259, %v500
    %v517 = vsub.f32 %v260, %v501
    %v518 = vsub.f32 %v261, %v502
    %v519 = vsub.f32 %v262, %v503
    %v520 = vsub.f32 %v263, %v504
    %v521 = vsub.f32 %v264, %v505
    %vm522 = vcmp.gt.f32.partialorder %v506, 0.0
    %vm523 = vcmp.gt.f32.partialorder %v507, 0.0
    %vm524 = vcmp.gt.f32.partialorder %v508, 0.0
    %vm525 = vcmp.gt.f32.partialorder %v509, 0.0
    %vm526 = vcmp.gt.f32.partialorder %v510, 0.0
    %vm527 = vcmp.gt.f32.partialorder %v511, 0.0
    %vm528 = vcmp.gt.f32.partialorder %v512, 0.0
    %vm529 = vcmp.gt.f32.partialorder %v513, 0.0
    %vm530 = vcmp.gt.f32.partialorder %v514, 0.0
    %vm531 = vcmp.gt.f32.partialorder %v515, 0.0
    %vm532 = vcmp.gt.f32.partialorder %v516, 0.0
    %vm533 = vcmp.gt.f32.partialorder %v517, 0.0
    %vm534 = vcmp.gt.f32.partialorder %v518, 0.0
    %vm535 = vcmp.gt.f32.partialorder %v519, 0.0
    %vm536 = vcmp.gt.f32.partialorder %v520, 0.0
    %vm537 = vcmp.gt.f32.partialorder %v521, 0.0
    %v538 = vsel %vm522, 0.0005625, 0.0
    %v539 = vsel %vm523, 0.0005625, 0.0
    %v540 = vsel %vm524, 0.0005625, 0.0
    %v541 = vsel %vm525, 0.0005625, 0.0
    %v542 = vsel %vm526, 0.0005625, 0.0
    %v543 = vsel %vm527, 0.0005625, 0.0
    %v544 = vsel %vm528, 0.0005625, 0.0
    %v545 = vsel %vm529, 0.0005625, 0.0
    %v546 = vsel %vm530, 0.0005625, 0.0
    %v547 = vsel %vm531, 0.0005625, 0.0
    %v548 = vsel %vm532, 0.0005625, 0.0
    %v549 = vsel %vm533, 0.0005625, 0.0
    %v550 = vsel %vm534, 0.0005625, 0.0
    %v551 = vsel %vm535, 0.0005625, 0.0
    %v552 = vsel %vm536, 0.0005625, 0.0
    %v553 = vsel %vm537, 0.0005625, 0.0
    %v554 = vadd.f32 %v297, %v538
    %v555 = vadd.f32 %v298, %v539
    %v556 = vadd.f32 %v299, %v540
    %v557 = vadd.f32 %v300, %v541
    %v558 = vadd.f32 %v301, %v542
    %v559 = vadd.f32 %v302, %v543
    %v560 = vadd.f32 %v303, %v544
    %v561 = vadd.f32 %v304, %v545
    %v562 = vadd.f32 %v305, %v546
    %v563 = vadd.f32 %v306, %v547
    %v564 = vadd.f32 %v307, %v548
    %v565 = vadd.f32 %v308, %v549
    %v566 = vadd.f32 %v309, %v550
    %v567 = vadd.f32 %v310, %v551
    %v568 = vadd.f32 %v311, %v552
    %v569 = vadd.f32 %v312, %v553
    %v570 = vsel %vm522, 1, 0
    %v571 = vsel %vm523, 1, 0
    %v572 = vsel %vm524, 1, 0
    %v573 = vsel %vm525, 1, 0
    %v574 = vsel %vm526, 1, 0
    %v575 = vsel %vm527, 1, 0
    %v576 = vsel %vm528, 1, 0
    %v577 = vsel %vm529, 1, 0
    %v578 = vsel %vm530, 1, 0
    %v579 = vsel %vm531, 1, 0
    %v580 = vsel %vm532, 1, 0
    %v581 = vsel %vm533, 1, 0
    %v582 = vsel %vm534, 1, 0
    %v583 = vsel %vm535, 1, 0
    %v584 = vsel %vm536, 1, 0
    %v585 = vsel %vm537, 1, 0
    %v586 = vcvt.s32.f32 %v570
    %v587 = vcvt.s32.f32 %v571
    %v588 = vcvt.s32.f32 %v572
    %v589 = vcvt.s32.f32 %v573
    %v590 = vcvt.s32.f32 %v574
    %v591 = vcvt.s32.f32 %v575
    %v592 = vcvt.s32.f32 %v576
    %v593 = vcvt.s32.f32 %v577
    %v594 = vcvt.s32.f32 %v578
    %v595 = vcvt.s32.f32 %v579
    %v596 = vcvt.s32.f32 %v580
    %v597 = vcvt.s32.f32 %v581
    %v598 = vcvt.s32.f32 %v582
    %v599 = vcvt.s32.f32 %v583
    %v600 = vcvt.s32.f32 %v584
    %v601 = vcvt.s32.f32 %v585
    %602 = vmatprep.subr.mxu0 0.0
    %603 = vmatpush1.msra.mxu0 %v81
    %604 = vmatprep.subr.mxu0 0.0
    %605 = vmatpush1.msra.mxu0 %v82
    %606 = vmatprep.subr.mxu0 0.0
    %607 = vmatpush1.msra.mxu0 %v83
    %608 = vmatprep.subr.mxu0 0.0
    %609 = vmatpush1.msra.mxu0 %v84
    %610 = vmatprep.subr.mxu0 0.0
    %611 = vmatpush1.msra.mxu0 %v85
    %612 = vmatprep.subr.mxu0 0.0
    %613 = vmatpush1.msra.mxu0 %v86
    %614 = vmatprep.subr.mxu0 0.0
    %615 = vmatpush1.msra.mxu0 %v87
    %616 = vmatprep.subr.mxu0 0.0
    %617 = vmatpush1.msra.mxu0 %v88
    %618 = vmatprep.subr.mxu0 0.0
    %619 = vmatpush1.msra.mxu0 %v89
    %620 = vmatprep.subr.mxu0 0.0
    %621 = vmatpush1.msra.mxu0 %v90
    %622 = vmatprep.subr.mxu0 0.0
    %623 = vmatpush1.msra.mxu0 %v91
    %624 = vmatprep.subr.mxu0 0.0
    %625 = vmatpush1.msra.mxu0 %v92
    %626 = vmatprep.subr.mxu0 0.0
    %627 = vmatpush1.msra.mxu0 %v93
    %628 = vmatprep.subr.mxu0 0.0
    %629 = vmatpush1.msra.mxu0 %v94
    %630 = vmatprep.subr.mxu0 0.0
    %631 = vmatpush1.msra.mxu0 %v95
    %632 = vmatprep.subr.mxu0 0.0
    %633 = vmatpush1.msra.mxu0 %v96
    %634 = vmatprep.subr.mxu0 0.0
    %635 = vmatpush1.msra.mxu0 0.0
    %636 = vmatprep.subr.mxu0 0.0
    %637 = vmatpush1.msra.mxu0 0.0
    %638 = vmatprep.subr.mxu0 0.0
    %639 = vmatpush1.msra.mxu0 0.0
    %640 = vmatprep.subr.mxu0 0.0
    %641 = vmatpush1.msra.mxu0 0.0
    %642 = vmatprep.subr.mxu0 0.0
    %643 = vmatpush1.msra.mxu0 0.0
    %644 = vmatprep.subr.mxu0 0.0
    %645 = vmatpush1.msra.mxu0 0.0
    %646 = vmatprep.subr.mxu0 0.0
    %647 = vmatpush1.msra.mxu0 0.0
    %648 = vmatprep.subr.mxu0 0.0
    %649 = vmatpush1.msra.mxu0 0.0
    %650 = vmatprep.subr.mxu0 0.0
    %651 = vmatpush1.msra.mxu0 0.0
    %652 = vmatprep.subr.mxu0 0.0
    %653 = vmatpush1.msra.mxu0 0.0
    %654 = vmatprep.subr.mxu0 0.0
    %655 = vmatpush1.msra.mxu0 0.0
    %656 = vmatprep.subr.mxu0 0.0
    %657 = vmatpush1.msra.mxu0 0.0
    %658 = vmatprep.subr.mxu0 0.0
    %659 = vmatpush1.msra.mxu0 0.0
    %660 = vmatprep.subr.mxu0 0.0
    %661 = vmatpush1.msra.mxu0 0.0
    %662 = vmatprep.subr.mxu0 0.0
    %663 = vmatpush1.msra.mxu0 0.0
    %664 = vmatprep.subr.mxu0 0.0
    %665 = vmatpush1.msra.mxu0 0.0
    %666 = vmatprep.mubr.f32.mxu0 0.0
    %667 = vmatmul.mubr.f32.gmra.mrb[0].mxu0 %v586
    %v668 = vpop.f32.mrb[0].mxu0
    %v669 = vadd.f32 0.0, %v668
    %v670 = vpop.f32.mrb[0].mxu0
    %671 = vmatprep.mubr.f32.mxu0 0.0
    %672 = vmatmul.mubr.f32.gmra.mrb[0].mxu0 %v587
    %v673 = vpop.f32.mrb[0].mxu0
    %v674 = vadd.f32 0.0, %v673
    %v675 = vpop.f32.mrb[0].mxu0
    %676 = vmatprep.mubr.f32.mxu0 0.0
    %677 = vmatmul.mubr.f32.gmra.mrb[0].mxu0 %v588
    %v678 = vpop.f32.mrb[0].mxu0
    %v679 = vadd.f32 0.0, %v678
    %v680 = vpop.f32.mrb[0].mxu0
    %681 = vmatprep.mubr.f32.mxu0 0.0
    %682 = vmatmul.mubr.f32.gmra.mrb[0].mxu0 %v589
    %v683 = vpop.f32.mrb[0].mxu0
    %v684 = vadd.f32 0.0, %v683
    %v685 = vpop.f32.mrb[0].mxu0
    %686 = vmatprep.mubr.f32.mxu0 0.0
    %687 = vmatmul.mubr.f32.gmra.mrb[0].mxu0 %v590
    %v688 = vpop.f32.mrb[0].mxu0
    %v689 = vadd.f32 0.0, %v688
    %v690 = vpop.f32.mrb[0].mxu0
    %691 = vmatprep.mubr.f32.mxu0 0.0
    %692 = vmatmul.mubr.f32.gmra.mrb[0].mxu0 %v591
    %v693 = vpop.f32.mrb[0].mxu0
    %v694 = vadd.f32 0.0, %v693
    %v695 = vpop.f32.mrb[0].mxu0
    %696 = vmatprep.mubr.f32.mxu0 0.0
    %697 = vmatmul.mubr.f32.gmra.mrb[0].mxu0 %v592
    %v698 = vpop.f32.mrb[0].mxu0
    %v699 = vadd.f32 0.0, %v698
    %v700 = vpop.f32.mrb[0].mxu0
    %701 = vmatprep.mubr.f32.mxu0 0.0
    %702 = vmatmul.mubr.f32.gmra.mrb[0].mxu0 %v593
    %v703 = vpop.f32.mrb[0].mxu0
    %v704 = vadd.f32 0.0, %v703
    %v705 = vpop.f32.mrb[0].mxu0
    %706 = vmatprep.mubr.f32.mxu0 0.0
    %707 = vmatmul.mubr.f32.gmra.mrb[0].mxu0 %v594
    %v708 = vpop.f32.mrb[0].mxu0
    %v709 = vadd.f32 0.0, %v708
    %v710 = vpop.f32.mrb[0].mxu0
    %711 = vmatprep.mubr.f32.mxu0 0.0
    %712 = vmatmul.mubr.f32.gmra.mrb[0].mxu0 %v595
    %v713 = vpop.f32.mrb[0].mxu0
    %v714 = vadd.f32 0.0, %v713
    %v715 = vpop.f32.mrb[0].mxu0
    %716 = vmatprep.mubr.f32.mxu0 0.0
    %717 = vmatmul.mubr.f32.gmra.mrb[0].mxu0 %v596
    %v718 = vpop.f32.mrb[0].mxu0
    %v719 = vadd.f32 0.0, %v718
    %v720 = vpop.f32.mrb[0].mxu0
    %721 = vmatprep.mubr.f32.mxu0 0.0
    %722 = vmatmul.mubr.f32.gmra.mrb[0].mxu0 %v597
    %v723 = vpop.f32.mrb[0].mxu0
    %v724 = vadd.f32 0.0, %v723
    %v725 = vpop.f32.mrb[0].mxu0
    %726 = vmatprep.mubr.f32.mxu0 0.0
    %727 = vmatmul.mubr.f32.gmra.mrb[0].mxu0 %v598
    %v728 = vpop.f32.mrb[0].mxu0
    %v729 = vadd.f32 0.0, %v728
    %v730 = vpop.f32.mrb[0].mxu0
    %731 = vmatprep.mubr.f32.mxu0 0.0
    %732 = vmatmul.mubr.f32.gmra.mrb[0].mxu0 %v599
    %v733 = vpop.f32.mrb[0].mxu0
    %v734 = vadd.f32 0.0, %v733
    %v735 = vpop.f32.mrb[0].mxu0
    %736 = vmatprep.mubr.f32.mxu0 0.0
    %737 = vmatmul.mubr.f32.gmra.mrb[0].mxu0 %v600
    %v738 = vpop.f32.mrb[0].mxu0
    %v739 = vadd.f32 0.0, %v738
    %v740 = vpop.f32.mrb[0].mxu0
    %741 = vmatprep.mubr.f32.mxu0 0.0
    %742 = vmatmul.mubr.f32.gmra.mrb[0].mxu0 %v601
    %v743 = vpop.f32.mrb[0].mxu0
    %v744 = vadd.f32 0.0, %v743
    %v745 = vpop.f32.mrb[0].mxu0
    %746 = vdwg.mxu0
    %v747 = vmul.f32 %v669, 0.0005625
    %v748 = vmul.f32 %v674, 0.0005625
    %v749 = vmul.f32 %v679, 0.0005625
    %v750 = vmul.f32 %v684, 0.0005625
    %v751 = vmul.f32 %v689, 0.0005625
    %v752 = vmul.f32 %v694, 0.0005625
    %v753 = vmul.f32 %v699, 0.0005625
    %v754 = vmul.f32 %v704, 0.0005625
    %v755 = vmul.f32 %v709, 0.0005625
    %v756 = vmul.f32 %v714, 0.0005625
    %v757 = vmul.f32 %v719, 0.0005625
    %v758 = vmul.f32 %v724, 0.0005625
    %v759 = vmul.f32 %v729, 0.0005625
    %v760 = vmul.f32 %v734, 0.0005625
    %v761 = vmul.f32 %v739, 0.0005625
    %v762 = vmul.f32 %v744, 0.0005625
    %v763 = vsub.f32 %v506, %v747
    %v764 = vsub.f32 %v507, %v748
    %v765 = vsub.f32 %v508, %v749
    %v766 = vsub.f32 %v509, %v750
    %v767 = vsub.f32 %v510, %v751
    %v768 = vsub.f32 %v511, %v752
    %v769 = vsub.f32 %v512, %v753
    %v770 = vsub.f32 %v513, %v754
    %v771 = vsub.f32 %v514, %v755
    %v772 = vsub.f32 %v515, %v756
    %v773 = vsub.f32 %v516, %v757
    %v774 = vsub.f32 %v517, %v758
    %v775 = vsub.f32 %v518, %v759
    %v776 = vsub.f32 %v519, %v760
    %v777 = vsub.f32 %v520, %v761
    %v778 = vsub.f32 %v521, %v762
    %vm779 = vcmp.gt.f32.partialorder %v763, 0.0
    %vm780 = vcmp.gt.f32.partialorder %v764, 0.0
    %vm781 = vcmp.gt.f32.partialorder %v765, 0.0
    %vm782 = vcmp.gt.f32.partialorder %v766, 0.0
    %vm783 = vcmp.gt.f32.partialorder %v767, 0.0
    %vm784 = vcmp.gt.f32.partialorder %v768, 0.0
    %vm785 = vcmp.gt.f32.partialorder %v769, 0.0
    %vm786 = vcmp.gt.f32.partialorder %v770, 0.0
    %vm787 = vcmp.gt.f32.partialorder %v771, 0.0
    %vm788 = vcmp.gt.f32.partialorder %v772, 0.0
    %vm789 = vcmp.gt.f32.partialorder %v773, 0.0
    %vm790 = vcmp.gt.f32.partialorder %v774, 0.0
    %vm791 = vcmp.gt.f32.partialorder %v775, 0.0
    %vm792 = vcmp.gt.f32.partialorder %v776, 0.0
    %vm793 = vcmp.gt.f32.partialorder %v777, 0.0
    %vm794 = vcmp.gt.f32.partialorder %v778, 0.0
    %v795 = vsel %vm779, 0.00050625, 0.0
    %v796 = vsel %vm780, 0.00050625, 0.0
    %v797 = vsel %vm781, 0.00050625, 0.0
    %v798 = vsel %vm782, 0.00050625, 0.0
    %v799 = vsel %vm783, 0.00050625, 0.0
    %v800 = vsel %vm784, 0.00050625, 0.0
    %v801 = vsel %vm785, 0.00050625, 0.0
    %v802 = vsel %vm786, 0.00050625, 0.0
    %v803 = vsel %vm787, 0.00050625, 0.0
    %v804 = vsel %vm788, 0.00050625, 0.0
    %v805 = vsel %vm789, 0.00050625, 0.0
    %v806 = vsel %vm790, 0.00050625, 0.0
    %v807 = vsel %vm791, 0.00050625, 0.0
    %v808 = vsel %vm792, 0.00050625, 0.0
    %v809 = vsel %vm793, 0.00050625, 0.0
    %v810 = vsel %vm794, 0.00050625, 0.0
    %v811 = vadd.f32 %v554, %v795
    %v812 = vadd.f32 %v555, %v796
    %v813 = vadd.f32 %v556, %v797
    %v814 = vadd.f32 %v557, %v798
    %v815 = vadd.f32 %v558, %v799
    %v816 = vadd.f32 %v559, %v800
    %v817 = vadd.f32 %v560, %v801
    %v818 = vadd.f32 %v561, %v802
    %v819 = vadd.f32 %v562, %v803
    %v820 = vadd.f32 %v563, %v804
    %v821 = vadd.f32 %v564, %v805
    %v822 = vadd.f32 %v565, %v806
    %v823 = vadd.f32 %v566, %v807
    %v824 = vadd.f32 %v567, %v808
    %v825 = vadd.f32 %v568, %v809
    %v826 = vadd.f32 %v569, %v810
    %v827 = vld [vmem:[%s1] sm:$0xff]
    %v828 = vld [vmem:[%s1 + $0x8] sm:$0xff]
    %v829 = vld [vmem:[%s1 + $0x10] sm:$0xff]
    %v830 = vld [vmem:[%s1 + $0x18] sm:$0xff]
    %v831 = vld [vmem:[%s1 + $0x20] sm:$0xff]
    %v832 = vld [vmem:[%s1 + $0x28] sm:$0xff]
    %v833 = vld [vmem:[%s1 + $0x30] sm:$0xff]
    %v834 = vld [vmem:[%s1 + $0x38] sm:$0xff]
    %v835 = vld [vmem:[%s1 + $0x40] sm:$0xff]
    %v836 = vld [vmem:[%s1 + $0x48] sm:$0xff]
    %v837 = vld [vmem:[%s1 + $0x50] sm:$0xff]
    %v838 = vld [vmem:[%s1 + $0x58] sm:$0xff]
    %v839 = vld [vmem:[%s1 + $0x60] sm:$0xff]
    %v840 = vld [vmem:[%s1 + $0x68] sm:$0xff]
    %v841 = vld [vmem:[%s1 + $0x70] sm:$0xff]
    %v842 = vld [vmem:[%s1 + $0x78] sm:$0xff]
    %843 = vmatprep.subr.mxu0 0.0
    %844 = vmatpush1.msra.mxu0 %v827
    %845 = vmatprep.subr.mxu0 0.0
    %846 = vmatpush1.msra.mxu0 %v828
    %847 = vmatprep.subr.mxu0 0.0
    %848 = vmatpush1.msra.mxu0 %v829
    %849 = vmatprep.subr.mxu0 0.0
    %850 = vmatpush1.msra.mxu0 %v830
    %851 = vmatprep.subr.mxu0 0.0
    %852 = vmatpush1.msra.mxu0 %v831
    %853 = vmatprep.subr.mxu0 0.0
    %854 = vmatpush1.msra.mxu0 %v832
    %855 = vmatprep.subr.mxu0 0.0
    %856 = vmatpush1.msra.mxu0 %v833
    %857 = vmatprep.subr.mxu0 0.0
    %858 = vmatpush1.msra.mxu0 %v834
    %859 = vmatprep.subr.mxu0 0.0
    %860 = vmatpush1.msra.mxu0 %v835
    %861 = vmatprep.subr.mxu0 0.0
    %862 = vmatpush1.msra.mxu0 %v836
    %863 = vmatprep.subr.mxu0 0.0
    %864 = vmatpush1.msra.mxu0 %v837
    %865 = vmatprep.subr.mxu0 0.0
    %866 = vmatpush1.msra.mxu0 %v838
    %867 = vmatprep.subr.mxu0 0.0
    %868 = vmatpush1.msra.mxu0 %v839
    %869 = vmatprep.subr.mxu0 0.0
    %870 = vmatpush1.msra.mxu0 %v840
    %871 = vmatprep.subr.mxu0 0.0
    %872 = vmatpush1.msra.mxu0 %v841
    %873 = vmatprep.subr.mxu0 0.0
    %874 = vmatpush1.msra.mxu0 %v842
    %875 = vmatprep.subr.mxu0 0.0
    %876 = vmatpush1.msra.mxu0 0.0
    %877 = vmatprep.subr.mxu0 0.0
    %878 = vmatpush1.msra.mxu0 0.0
    %879 = vmatprep.subr.mxu0 0.0
    %880 = vmatpush1.msra.mxu0 0.0
    %881 = vmatprep.subr.mxu0 0.0
    %882 = vmatpush1.msra.mxu0 0.0
    %883 = vmatprep.subr.mxu0 0.0
    %884 = vmatpush1.msra.mxu0 0.0
    %885 = vmatprep.subr.mxu0 0.0
    %886 = vmatpush1.msra.mxu0 0.0
    %887 = vmatprep.subr.mxu0 0.0
    %888 = vmatpush1.msra.mxu0 0.0
    %889 = vmatprep.subr.mxu0 0.0
    %890 = vmatpush1.msra.mxu0 0.0
    %891 = vmatprep.subr.mxu0 0.0
    %892 = vmatpush1.msra.mxu0 0.0
    %893 = vmatprep.subr.mxu0 0.0
    %894 = vmatpush1.msra.mxu0 0.0
    %895 = vmatprep.subr.mxu0 0.0
    %896 = vmatpush1.msra.mxu0 0.0
    %897 = vmatprep.subr.mxu0 0.0
    %898 = vmatpush1.msra.mxu0 0.0
    %899 = vmatprep.subr.mxu0 0.0
    %900 = vmatpush1.msra.mxu0 0.0
    %901 = vmatprep.subr.mxu0 0.0
    %902 = vmatpush1.msra.mxu0 0.0
    %903 = vmatprep.subr.mxu0 0.0
    %904 = vmatpush1.msra.mxu0 0.0
    %905 = vmatprep.subr.mxu0 0.0
    %906 = vmatpush1.msra.mxu0 0.0
    %907 = vmatprep.mubr.f32.mxu0 0.0
    %908 = vmatmul.mubr.f32.gmra.mrb[0].mxu0 %v811
    %v909 = vpop.f32.mrb[0].mxu0
    %v910 = vadd.f32 0.0, %v909
    %v911 = vpop.f32.mrb[0].mxu0
    %912 = vmatprep.mubr.f32.mxu0 0.0
    %913 = vmatmul.mubr.f32.gmra.mrb[0].mxu0 %v812
    %v914 = vpop.f32.mrb[0].mxu0
    %v915 = vadd.f32 0.0, %v914
    %v916 = vpop.f32.mrb[0].mxu0
    %917 = vmatprep.mubr.f32.mxu0 0.0
    %918 = vmatmul.mubr.f32.gmra.mrb[0].mxu0 %v813
    %v919 = vpop.f32.mrb[0].mxu0
    %v920 = vadd.f32 0.0, %v919
    %v921 = vpop.f32.mrb[0].mxu0
    %922 = vmatprep.mubr.f32.mxu0 0.0
    %923 = vmatmul.mubr.f32.gmra.mrb[0].mxu0 %v814
    %v924 = vpop.f32.mrb[0].mxu0
    %v925 = vadd.f32 0.0, %v924
    %v926 = vpop.f32.mrb[0].mxu0
    %927 = vmatprep.mubr.f32.mxu0 0.0
    %928 = vmatmul.mubr.f32.gmra.mrb[0].mxu0 %v815
    %v929 = vpop.f32.mrb[0].mxu0
    %v930 = vadd.f32 0.0, %v929
    %v931 = vpop.f32.mrb[0].mxu0
    %932 = vmatprep.mubr.f32.mxu0 0.0
    %933 = vmatmul.mubr.f32.gmra.mrb[0].mxu0 %v816
    %v934 = vpop.f32.mrb[0].mxu0
    %v935 = vadd.f32 0.0, %v934
    %v936 = vpop.f32.mrb[0].mxu0
    %937 = vmatprep.mubr.f32.mxu0 0.0
    %938 = vmatmul.mubr.f32.gmra.mrb[0].mxu0 %v817
    %v939 = vpop.f32.mrb[0].mxu0
    %v940 = vadd.f32 0.0, %v939
    %v941 = vpop.f32.mrb[0].mxu0
    %942 = vmatprep.mubr.f32.mxu0 0.0
    %943 = vmatmul.mubr.f32.gmra.mrb[0].mxu0 %v818
    %v944 = vpop.f32.mrb[0].mxu0
    %v945 = vadd.f32 0.0, %v944
    %v946 = vpop.f32.mrb[0].mxu0
    %947 = vmatprep.mubr.f32.mxu0 0.0
    %948 = vmatmul.mubr.f32.gmra.mrb[0].mxu0 %v819
    %v949 = vpop.f32.mrb[0].mxu0
    %v950 = vadd.f32 0.0, %v949
    %v951 = vpop.f32.mrb[0].mxu0
    %952 = vmatprep.mubr.f32.mxu0 0.0
    %953 = vmatmul.mubr.f32.gmra.mrb[0].mxu0 %v820
    %v954 = vpop.f32.mrb[0].mxu0
    %v955 = vadd.f32 0.0, %v954
    %v956 = vpop.f32.mrb[0].mxu0
    %957 = vmatprep.mubr.f32.mxu0 0.0
    %958 = vmatmul.mubr.f32.gmra.mrb[0].mxu0 %v821
    %v959 = vpop.f32.mrb[0].mxu0
    %v960 = vadd.f32 0.0, %v959
    %v961 = vpop.f32.mrb[0].mxu0
    %962 = vmatprep.mubr.f32.mxu0 0.0
    %963 = vmatmul.mubr.f32.gmra.mrb[0].mxu0 %v822
    %v964 = vpop.f32.mrb[0].mxu0
    %v965 = vadd.f32 0.0, %v964
    %v966 = vpop.f32.mrb[0].mxu0
    %967 = vmatprep.mubr.f32.mxu0 0.0
    %968 = vmatmul.mubr.f32.gmra.mrb[0].mxu0 %v823
    %v969 = vpop.f32.mrb[0].mxu0
    %v970 = vadd.f32 0.0, %v969
    %v971 = vpop.f32.mrb[0].mxu0
    %972 = vmatprep.mubr.f32.mxu0 0.0
    %973 = vmatmul.mubr.f32.gmra.mrb[0].mxu0 %v824
    %v974 = vpop.f32.mrb[0].mxu0
    %v975 = vadd.f32 0.0, %v974
    %v976 = vpop.f32.mrb[0].mxu0
    %977 = vmatprep.mubr.f32.mxu0 0.0
    %978 = vmatmul.mubr.f32.gmra.mrb[0].mxu0 %v825
    %v979 = vpop.f32.mrb[0].mxu0
    %v980 = vadd.f32 0.0, %v979
    %v981 = vpop.f32.mrb[0].mxu0
    %982 = vmatprep.mubr.f32.mxu0 0.0
    %983 = vmatmul.mubr.f32.gmra.mrb[0].mxu0 %v826
    %v984 = vpop.f32.mrb[0].mxu0
    %v985 = vadd.f32 0.0, %v984
    %v986 = vpop.f32.mrb[0].mxu0
    %987 = vdwg.mxu0
    %v988 = vsub.f32 %v49, %v910
    %v989 = vsub.f32 %v50, %v915
    %v990 = vsub.f32 %v51, %v920
    %v991 = vsub.f32 %v52, %v925
    %v992 = vsub.f32 %v53, %v930
    %v993 = vsub.f32 %v54, %v935
    %v994 = vsub.f32 %v55, %v940
    %v995 = vsub.f32 %v56, %v945
    %v996 = vsub.f32 %v57, %v950
    %v997 = vsub.f32 %v58, %v955
    %v998 = vsub.f32 %v59, %v960
    %v999 = vsub.f32 %v60, %v965
    %v1000 = vsub.f32 %v61, %v970
    %v1001 = vsub.f32 %v62, %v975
    %v1002 = vsub.f32 %v63, %v980
    %v1003 = vsub.f32 %v64, %v985
    %1004 = vst [vmem:[#allocation7] sm:$0xff] %v988
    %1005 = vst [vmem:[#allocation7 + $0x8] sm:$0xff] %v989
    %1006 = vst [vmem:[#allocation7 + $0x10] sm:$0xff] %v990
    %1007 = vst [vmem:[#allocation7 + $0x18] sm:$0xff] %v991
    %1008 = vst [vmem:[#allocation7 + $0x20] sm:$0xff] %v992
    %1009 = vst [vmem:[#allocation7 + $0x28] sm:$0xff] %v993
    %1010 = vst [vmem:[#allocation7 + $0x30] sm:$0xff] %v994
    %1011 = vst [vmem:[#allocation7 + $0x38] sm:$0xff] %v995
    %1012 = vst [vmem:[#allocation7 + $0x40] sm:$0xff] %v996
    %1013 = vst [vmem:[#allocation7 + $0x48] sm:$0xff] %v997
    %1014 = vst [vmem:[#allocation7 + $0x50] sm:$0xff] %v998
    %1015 = vst [vmem:[#allocation7 + $0x58] sm:$0xff] %v999
    %1016 = vst [vmem:[#allocation7 + $0x60] sm:$0xff] %v1000
    %1017 = vst [vmem:[#allocation7 + $0x68] sm:$0xff] %v1001
    %1018 = vst [vmem:[#allocation7 + $0x70] sm:$0xff] %v1002
    %1019 = vst [vmem:[#allocation7 + $0x78] sm:$0xff] %v1003
    // Predicated region
    $region30: #{tpu_custom_call.1} parent=1 // pred_check
      _
    $region31: #{tpu_custom_call.1} parent=1 // pred_check_branch
      %1021 = sbr.rel (0) target = $region33
    $region32: #{tpu_custom_call.1} parent=1 // pred_region
      %s1023 = ssub.s32 2048, 2048
      %1024 = vsyncadd [#allocation4], %s1023
      %s1025 = sshll.u32 [#allocation7], 4
      %s1026 = int_to_ptr.vmem [resolvable:$true] %s1025
      %1031 = dma.vmem_to_hbm [thread:$0]  %s1026, 2048, %s5, [#allocation4], 128, 128, 8
    $region33: #{tpu_custom_call.1} parent=1 // pred_fallthru
      _
    // Predicated region
    $region34: #{tpu_custom_call.1} parent=1 // pred_check
      _
    $region35: #{tpu_custom_call.1} parent=1 // pred_check_branch
      %1033 = sbr.rel (0) target = $region37
    $region36: #{tpu_custom_call.1} parent=1 // pred_region
      %1034 = dma.done [#allocation4], 2048
    $region37: #{tpu_custom_call.1} parent=1 // pred_fallthru
      _
    %1035 = vsyncpa [#allocation3], 1
    %1036 = vsyncpa [#allocation6], 1
    %1037 = vsyncpa [#allocation4], 1

// kernel: tpu_custom_call.1
$region0: #{tpu_custom_call.1}
  #allocation0 [shape = 'u32[]', space=smem, size = 0x4, offset = 0x4, fixed_abs, tag = 'smem constant byte address 0x4 - core index']
  #allocation1 [shape = 'u32[144,128]{1,0:T(1,128)}', space=vmem, size = 0x12000, scoped, tag = 'internal scratch']
  %s0 = inlined_call_operand.hbm [shape: f32[128,128], index: 0, kind: input, shape index: {}, may-alias: {0,5}]
  %s1 = inlined_call_operand.vmem [shape: f32[128,128], index: 1, kind: input, shape index: {}]
  %s2 = inlined_call_operand.vmem [shape: f32[128,128], index: 2, kind: input, shape index: {}]
  %s3 = inlined_call_operand.hbm [shape: f32[128,128], index: 3, kind: input, shape index: {}]
  %s4 = inlined_call_operand.vmem [shape: f32[1,128], index: 4, kind: input, shape index: {}]
  %s5 = inlined_call_operand.hbm [shape: f32[128,128], index: 5, kind: output, shape index: {}, may-alias: {0,5}]
  %s6 = sld [smem:[#allocation0]]
  $region38: #{tpu_custom_call.1} parent=0
    _
  %s8 = ssub.s32 1, %s6
  %s9 = scalar_select 0, %s8, %s6
  $region1: #{tpu_custom_call.1} parent=0
    #allocation2 [shape = 'u8[65536]{0}', space=vmem, size = 0x10000, scoped, tag = 'input window, operand 0, single buffered']
    #allocation3 [shape = 's32[1]{0}', space=sflag, size = 0x4, scoped, tag = 'scoped memory for tpu_custom_call.1']
    #allocation4 [shape = 's32[1]{0}', space=sflag, size = 0x4, scoped, tag = 'scoped memory for tpu_custom_call.1']
    #allocation5 [shape = 'u8[65536]{0}', space=vmem, size = 0x10000, scoped, tag = 'input window, operand 3, single buffered']
    #allocation6 [shape = 's32[1]{0}', space=sflag, size = 0x4, scoped, tag = 'scoped memory for tpu_custom_call.1']
    #allocation7 [shape = 'u8[65536]{0}', space=vmem, size = 0x10000, scoped, tag = 'output window, operand 0, single buffered']
    %10 = vsyncpa [#allocation3], 0
    %11 = vsyncpa [#allocation6], 0
    %12 = vsyncpa [#allocation4], 0
    // Predicated region
    $region2: #{tpu_custom_call.1} parent=1 // pred_check
      _
    $region3: #{tpu_custom_call.1} parent=1 // pred_check_branch
      %14 = sbr.rel (0) target = $region5
    $region4: #{tpu_custom_call.1} parent=1 // pred_region
      %s16 = ssub.s32 2048, 2048
      %17 = vsyncadd [#allocation3], %s16
      %s18 = sshll.u32 [#allocation2], 4
      %s19 = int_to_ptr.vmem [resolvable:$true] %s18
      %24 = dma.hbm_to_vmem [thread:$0]  %s0, 2048, %s19, [#allocation3], 128, 128, 8
    $region5: #{tpu_custom_call.1} parent=1 // pred_fallthru
      _
    // Predicated region
    $region6: #{tpu_custom_call.1} parent=1 // pred_check
      _
    $region7: #{tpu_custom_call.1} parent=1 // pred_check_branch
      %26 = sbr.rel (0) target = $region9
    $region8: #{tpu_custom_call.1} parent=1 // pred_region
      _
    $region9: #{tpu_custom_call.1} parent=1 // pred_fallthru
      _
    // Predicated region
    $region10: #{tpu_custom_call.1} parent=1 // pred_check
      _
    $region11: #{tpu_custom_call.1} parent=1 // pred_check_branch
      %28 = sbr.rel (0) target = $region13
    $region12: #{tpu_custom_call.1} parent=1 // pred_region
      _
    $region13: #{tpu_custom_call.1} parent=1 // pred_fallthru
      _
    // Predicated region
    $region14: #{tpu_custom_call.1} parent=1 // pred_check
      _
    $region15: #{tpu_custom_call.1} parent=1 // pred_check_branch
      %30 = sbr.rel (0) target = $region17
    $region16: #{tpu_custom_call.1} parent=1 // pred_region
      %s32 = ssub.s32 2048, 2048
      %33 = vsyncadd [#allocation6], %s32
      %s34 = sshll.u32 [#allocation5], 4
      %s35 = int_to_ptr.vmem [resolvable:$true] %s34
      %40 = dma.hbm_to_vmem [thread:$0]  %s3, 2048, %s35, [#allocation6], 128, 128, 8
    $region17: #{tpu_custom_call.1} parent=1 // pred_fallthru
      _
    // Predicated region
    $region18: #{tpu_custom_call.1} parent=1 // pred_check
      _
    $region19: #{tpu_custom_call.1} parent=1 // pred_check_branch
      %42 = sbr.rel (0) target = $region21
    $region20: #{tpu_custom_call.1} parent=1 // pred_region
      _
    $region21: #{tpu_custom_call.1} parent=1 // pred_fallthru
      _
    // Predicated region
    $region22: #{tpu_custom_call.1} parent=1 // pred_check
      _
    $region23: #{tpu_custom_call.1} parent=1 // pred_check_branch
      %44 = sbr.rel (0) target = $region25
    $region24: #{tpu_custom_call.1} parent=1 // pred_region
      %45 = dma.done [#allocation3], 2048
    $region25: #{tpu_custom_call.1} parent=1 // pred_fallthru
      _
    // Predicated region
    $region26: #{tpu_custom_call.1} parent=1 // pred_check
      _
    $region27: #{tpu_custom_call.1} parent=1 // pred_check_branch
      %47 = sbr.rel (0) target = $region29
    $region28: #{tpu_custom_call.1} parent=1 // pred_region
      %48 = dma.done [#allocation6], 2048
    $region29: #{tpu_custom_call.1} parent=1 // pred_fallthru
      _
    %v49 = vld [vmem:[#allocation2] sm:$0xff]
    %v50 = vld [vmem:[#allocation2 + $0x8] sm:$0xff]
    %v51 = vld [vmem:[#allocation2 + $0x10] sm:$0xff]
    %v52 = vld [vmem:[#allocation2 + $0x18] sm:$0xff]
    %v53 = vld [vmem:[#allocation2 + $0x20] sm:$0xff]
    %v54 = vld [vmem:[#allocation2 + $0x28] sm:$0xff]
    %v55 = vld [vmem:[#allocation2 + $0x30] sm:$0xff]
    %v56 = vld [vmem:[#allocation2 + $0x38] sm:$0xff]
    %v57 = vld [vmem:[#allocation2 + $0x40] sm:$0xff]
    %v58 = vld [vmem:[#allocation2 + $0x48] sm:$0xff]
    %v59 = vld [vmem:[#allocation2 + $0x50] sm:$0xff]
    %v60 = vld [vmem:[#allocation2 + $0x58] sm:$0xff]
    %v61 = vld [vmem:[#allocation2 + $0x60] sm:$0xff]
    %v62 = vld [vmem:[#allocation2 + $0x68] sm:$0xff]
    %v63 = vld [vmem:[#allocation2 + $0x70] sm:$0xff]
    %v64 = vld [vmem:[#allocation2 + $0x78] sm:$0xff]
    %v65 = vld [vmem:[%s2] sm:$0xff]
    %v66 = vld [vmem:[%s2 + $0x8] sm:$0xff]
    %v67 = vld [vmem:[%s2 + $0x10] sm:$0xff]
    %v68 = vld [vmem:[%s2 + $0x18] sm:$0xff]
    %v69 = vld [vmem:[%s2 + $0x20] sm:$0xff]
    %v70 = vld [vmem:[%s2 + $0x28] sm:$0xff]
    %v71 = vld [vmem:[%s2 + $0x30] sm:$0xff]
    %v72 = vld [vmem:[%s2 + $0x38] sm:$0xff]
    %v73 = vld [vmem:[%s2 + $0x40] sm:$0xff]
    %v74 = vld [vmem:[%s2 + $0x48] sm:$0xff]
    %v75 = vld [vmem:[%s2 + $0x50] sm:$0xff]
    %v76 = vld [vmem:[%s2 + $0x58] sm:$0xff]
    %v77 = vld [vmem:[%s2 + $0x60] sm:$0xff]
    %v78 = vld [vmem:[%s2 + $0x68] sm:$0xff]
    %v79 = vld [vmem:[%s2 + $0x70] sm:$0xff]
    %v80 = vld [vmem:[%s2 + $0x78] sm:$0xff]
    %v81 = vld [vmem:[#allocation5] sm:$0xff]
    %v82 = vld [vmem:[#allocation5 + $0x8] sm:$0xff]
    %v83 = vld [vmem:[#allocation5 + $0x10] sm:$0xff]
    %v84 = vld [vmem:[#allocation5 + $0x18] sm:$0xff]
    %v85 = vld [vmem:[#allocation5 + $0x20] sm:$0xff]
    %v86 = vld [vmem:[#allocation5 + $0x28] sm:$0xff]
    %v87 = vld [vmem:[#allocation5 + $0x30] sm:$0xff]
    %v88 = vld [vmem:[#allocation5 + $0x38] sm:$0xff]
    %v89 = vld [vmem:[#allocation5 + $0x40] sm:$0xff]
    %v90 = vld [vmem:[#allocation5 + $0x48] sm:$0xff]
    %v91 = vld [vmem:[#allocation5 + $0x50] sm:$0xff]
    %v92 = vld [vmem:[#allocation5 + $0x58] sm:$0xff]
    %v93 = vld [vmem:[#allocation5 + $0x60] sm:$0xff]
    %v94 = vld [vmem:[#allocation5 + $0x68] sm:$0xff]
    %v95 = vld [vmem:[#allocation5 + $0x70] sm:$0xff]
    %v96 = vld [vmem:[#allocation5 + $0x78] sm:$0xff]
    %v97 = vld [vmem:[%s4] sm:$0x1]
    %98 = vmatprep.subr.mxu0 0.0
    %99 = vmatpush1.msra.mxu0 %v65
    %100 = vmatprep.subr.mxu0 0.0
    %101 = vmatpush1.msra.mxu0 %v66
    %102 = vmatprep.subr.mxu0 0.0
    %103 = vmatpush1.msra.mxu0 %v67
    %104 = vmatprep.subr.mxu0 0.0
    %105 = vmatpush1.msra.mxu0 %v68
    %106 = vmatprep.subr.mxu0 0.0
    %107 = vmatpush1.msra.mxu0 %v69
    %108 = vmatprep.subr.mxu0 0.0
    %109 = vmatpush1.msra.mxu0 %v70
    %110 = vmatprep.subr.mxu0 0.0
    %111 = vmatpush1.msra.mxu0 %v71
    %112 = vmatprep.subr.mxu0 0.0
    %113 = vmatpush1.msra.mxu0 %v72
    %114 = vmatprep.subr.mxu0 0.0
    %115 = vmatpush1.msra.mxu0 %v73
    %116 = vmatprep.subr.mxu0 0.0
    %117 = vmatpush1.msra.mxu0 %v74
    %118 = vmatprep.subr.mxu0 0.0
    %119 = vmatpush1.msra.mxu0 %v75
    %120 = vmatprep.subr.mxu0 0.0
    %121 = vmatpush1.msra.mxu0 %v76
    %122 = vmatprep.subr.mxu0 0.0
    %123 = vmatpush1.msra.mxu0 %v77
    %124 = vmatprep.subr.mxu0 0.0
    %125 = vmatpush1.msra.mxu0 %v78
    %126 = vmatprep.subr.mxu0 0.0
    %127 = vmatpush1.msra.mxu0 %v79
    %128 = vmatprep.subr.mxu0 0.0
    %129 = vmatpush1.msra.mxu0 %v80
    %130 = vmatprep.subr.mxu0 0.0
    %131 = vmatpush1.msra.mxu0 0.0
    %132 = vmatprep.subr.mxu0 0.0
    %133 = vmatpush1.msra.mxu0 0.0
    %134 = vmatprep.subr.mxu0 0.0
    %135 = vmatpush1.msra.mxu0 0.0
    %136 = vmatprep.subr.mxu0 0.0
    %137 = vmatpush1.msra.mxu0 0.0
    %138 = vmatprep.subr.mxu0 0.0
    %139 = vmatpush1.msra.mxu0 0.0
    %140 = vmatprep.subr.mxu0 0.0
    %141 = vmatpush1.msra.mxu0 0.0
    %142 = vmatprep.subr.mxu0 0.0
    %143 = vmatpush1.msra.mxu0 0.0
    %144 = vmatprep.subr.mxu0 0.0
    %145 = vmatpush1.msra.mxu0 0.0
    %146 = vmatprep.subr.mxu0 0.0
    %147 = vmatpush1.msra.mxu0 0.0
    %148 = vmatprep.subr.mxu0 0.0
    %149 = vmatpush1.msra.mxu0 0.0
    %150 = vmatprep.subr.mxu0 0.0
    %151 = vmatpush1.msra.mxu0 0.0
    %152 = vmatprep.subr.mxu0 0.0
    %153 = vmatpush1.msra.mxu0 0.0
    %154 = vmatprep.subr.mxu0 0.0
    %155 = vmatpush1.msra.mxu0 0.0
    %156 = vmatprep.subr.mxu0 0.0
    %157 = vmatpush1.msra.mxu0 0.0
    %158 = vmatprep.subr.mxu0 0.0
    %159 = vmatpush1.msra.mxu0 0.0
    %160 = vmatprep.subr.mxu0 0.0
    %161 = vmatpush1.msra.mxu0 0.0
    %162 = vmatprep.mubr.f32.mxu0 0.0
    %163 = vmatmul.mubr.f32.gmra.mrb[0].mxu0 %v49
    %v164 = vpop.f32.mrb[0].mxu0
    %v165 = vadd.f32 0.0, %v164
    %v166 = vpop.f32.mrb[0].mxu0
    %167 = vmatprep.mubr.f32.mxu0 0.0
    %168 = vmatmul.mubr.f32.gmra.mrb[0].mxu0 %v50
    %v169 = vpop.f32.mrb[0].mxu0
    %v170 = vadd.f32 0.0, %v169
    %v171 = vpop.f32.mrb[0].mxu0
    %172 = vmatprep.mubr.f32.mxu0 0.0
    %173 = vmatmul.mubr.f32.gmra.mrb[0].mxu0 %v51
    %v174 = vpop.f32.mrb[0].mxu0
    %v175 = vadd.f32 0.0, %v174
    %v176 = vpop.f32.mrb[0].mxu0
    %177 = vmatprep.mubr.f32.mxu0 0.0
    %178 = vmatmul.mubr.f32.gmra.mrb[0].mxu0 %v52
    %v179 = vpop.f32.mrb[0].mxu0
    %v180 = vadd.f32 0.0, %v179
    %v181 = vpop.f32.mrb[0].mxu0
    %182 = vmatprep.mubr.f32.mxu0 0.0
    %183 = vmatmul.mubr.f32.gmra.mrb[0].mxu0 %v53
    %v184 = vpop.f32.mrb[0].mxu0
    %v185 = vadd.f32 0.0, %v184
    %v186 = vpop.f32.mrb[0].mxu0
    %187 = vmatprep.mubr.f32.mxu0 0.0
    %188 = vmatmul.mubr.f32.gmra.mrb[0].mxu0 %v54
    %v189 = vpop.f32.mrb[0].mxu0
    %v190 = vadd.f32 0.0, %v189
    %v191 = vpop.f32.mrb[0].mxu0
    %192 = vmatprep.mubr.f32.mxu0 0.0
    %193 = vmatmul.mubr.f32.gmra.mrb[0].mxu0 %v55
    %v194 = vpop.f32.mrb[0].mxu0
    %v195 = vadd.f32 0.0, %v194
    %v196 = vpop.f32.mrb[0].mxu0
    %197 = vmatprep.mubr.f32.mxu0 0.0
    %198 = vmatmul.mubr.f32.gmra.mrb[0].mxu0 %v56
    %v199 = vpop.f32.mrb[0].mxu0
    %v200 = vadd.f32 0.0, %v199
    %v201 = vpop.f32.mrb[0].mxu0
    %202 = vmatprep.mubr.f32.mxu0 0.0
    %203 = vmatmul.mubr.f32.gmra.mrb[0].mxu0 %v57
    %v204 = vpop.f32.mrb[0].mxu0
    %v205 = vadd.f32 0.0, %v204
    %v206 = vpop.f32.mrb[0].mxu0
    %207 = vmatprep.mubr.f32.mxu0 0.0
    %208 = vmatmul.mubr.f32.gmra.mrb[0].mxu0 %v58
    %v209 = vpop.f32.mrb[0].mxu0
    %v210 = vadd.f32 0.0, %v209
    %v211 = vpop.f32.mrb[0].mxu0
    %212 = vmatprep.mubr.f32.mxu0 0.0
    %213 = vmatmul.mubr.f32.gmra.mrb[0].mxu0 %v59
    %v214 = vpop.f32.mrb[0].mxu0
    %v215 = vadd.f32 0.0, %v214
    %v216 = vpop.f32.mrb[0].mxu0
    %217 = vmatprep.mubr.f32.mxu0 0.0
    %218 = vmatmul.mubr.f32.gmra.mrb[0].mxu0 %v60
    %v219 = vpop.f32.mrb[0].mxu0
    %v220 = vadd.f32 0.0, %v219
    %v221 = vpop.f32.mrb[0].mxu0
    %222 = vmatprep.mubr.f32.mxu0 0.0
    %223 = vmatmul.mubr.f32.gmra.mrb[0].mxu0 %v61
    %v224 = vpop.f32.mrb[0].mxu0
    %v225 = vadd.f32 0.0, %v224
    %v226 = vpop.f32.mrb[0].mxu0
    %227 = vmatprep.mubr.f32.mxu0 0.0
    %228 = vmatmul.mubr.f32.gmra.mrb[0].mxu0 %v62
    %v229 = vpop.f32.mrb[0].mxu0
    %v230 = vadd.f32 0.0, %v229
    %v231 = vpop.f32.mrb[0].mxu0
    %232 = vmatprep.mubr.f32.mxu0 0.0
    %233 = vmatmul.mubr.f32.gmra.mrb[0].mxu0 %v63
    %v234 = vpop.f32.mrb[0].mxu0
    %v235 = vadd.f32 0.0, %v234
    %v236 = vpop.f32.mrb[0].mxu0
    %237 = vmatprep.mubr.f32.mxu0 0.0
    %238 = vmatmul.mubr.f32.gmra.mrb[0].mxu0 %v64
    %v239 = vpop.f32.mrb[0].mxu0
    %v240 = vadd.f32 0.0, %v239
    %v241 = vpop.f32.mrb[0].mxu0
    %242 = vdwg.mxu0
    %v244 = vlaneseq
    %v245 = vshrl.u32 %v244, 7
    %v246 = vsub.s32 0, %v245
    %v247 = vrot.slane %v97, %v246
    %v249 = vsub.f32 %v165, %v247
    %v250 = vsub.f32 %v170, %v247
    %v251 = vsub.f32 %v175, %v247
    %v252 = vsub.f32 %v180, %v247
    %v253 = vsub.f32 %v185, %v247
    %v254 = vsub.f32 %v190, %v247
    %v255 = vsub.f32 %v195, %v247
    %v256 = vsub.f32 %v200, %v247
    %v257 = vsub.f32 %v205, %v247
    %v258 = vsub.f32 %v210, %v247
    %v259 = vsub.f32 %v215, %v247
    %v260 = vsub.f32 %v220, %v247
    %v261 = vsub.f32 %v225, %v247
    %v262 = vsub.f32 %v230, %v247
    %v263 = vsub.f32 %v235, %v247
    %v264 = vsub.f32 %v240, %v247
    %vm265 = vcmp.gt.f32.partialorder %v249, 0.0
    %vm266 = vcmp.gt.f32.partialorder %v250, 0.0
    %vm267 = vcmp.gt.f32.partialorder %v251, 0.0
    %vm268 = vcmp.gt.f32.partialorder %v252, 0.0
    %vm269 = vcmp.gt.f32.partialorder %v253, 0.0
    %vm270 = vcmp.gt.f32.partialorder %v254, 0.0
    %vm271 = vcmp.gt.f32.partialorder %v255, 0.0
    %vm272 = vcmp.gt.f32.partialorder %v256, 0.0
    %vm273 = vcmp.gt.f32.partialorder %v257, 0.0
    %vm274 = vcmp.gt.f32.partialorder %v258, 0.0
    %vm275 = vcmp.gt.f32.partialorder %v259, 0.0
    %vm276 = vcmp.gt.f32.partialorder %v260, 0.0
    %vm277 = vcmp.gt.f32.partialorder %v261, 0.0
    %vm278 = vcmp.gt.f32.partialorder %v262, 0.0
    %vm279 = vcmp.gt.f32.partialorder %v263, 0.0
    %vm280 = vcmp.gt.f32.partialorder %v264, 0.0
    %v281 = vsel %vm265, 0.000625, 0.0
    %v282 = vsel %vm266, 0.000625, 0.0
    %v283 = vsel %vm267, 0.000625, 0.0
    %v284 = vsel %vm268, 0.000625, 0.0
    %v285 = vsel %vm269, 0.000625, 0.0
    %v286 = vsel %vm270, 0.000625, 0.0
    %v287 = vsel %vm271, 0.000625, 0.0
    %v288 = vsel %vm272, 0.000625, 0.0
    %v289 = vsel %vm273, 0.000625, 0.0
    %v290 = vsel %vm274, 0.000625, 0.0
    %v291 = vsel %vm275, 0.000625, 0.0
    %v292 = vsel %vm276, 0.000625, 0.0
    %v293 = vsel %vm277, 0.000625, 0.0
    %v294 = vsel %vm278, 0.000625, 0.0
    %v295 = vsel %vm279, 0.000625, 0.0
    %v296 = vsel %vm280, 0.000625, 0.0
    %v297 = vadd.f32 %v281, 0.0
    %v298 = vadd.f32 %v282, 0.0
    %v299 = vadd.f32 %v283, 0.0
    %v300 = vadd.f32 %v284, 0.0
    %v301 = vadd.f32 %v285, 0.0
    %v302 = vadd.f32 %v286, 0.0
    %v303 = vadd.f32 %v287, 0.0
    %v304 = vadd.f32 %v288, 0.0
    %v305 = vadd.f32 %v289, 0.0
    %v306 = vadd.f32 %v290, 0.0
    %v307 = vadd.f32 %v291, 0.0
    %v308 = vadd.f32 %v292, 0.0
    %v309 = vadd.f32 %v293, 0.0
    %v310 = vadd.f32 %v294, 0.0
    %v311 = vadd.f32 %v295, 0.0
    %v312 = vadd.f32 %v296, 0.0
    %v313 = vsel %vm265, 1, 0
    %v314 = vsel %vm266, 1, 0
    %v315 = vsel %vm267, 1, 0
    %v316 = vsel %vm268, 1, 0
    %v317 = vsel %vm269, 1, 0
    %v318 = vsel %vm270, 1, 0
    %v319 = vsel %vm271, 1, 0
    %v320 = vsel %vm272, 1, 0
    %v321 = vsel %vm273, 1, 0
    %v322 = vsel %vm274, 1, 0
    %v323 = vsel %vm275, 1, 0
    %v324 = vsel %vm276, 1, 0
    %v325 = vsel %vm277, 1, 0
    %v326 = vsel %vm278, 1, 0
    %v327 = vsel %vm279, 1, 0
    %v328 = vsel %vm280, 1, 0
    %v329 = vcvt.s32.f32 %v313
    %v330 = vcvt.s32.f32 %v314
    %v331 = vcvt.s32.f32 %v315
    %v332 = vcvt.s32.f32 %v316
    %v333 = vcvt.s32.f32 %v317
    %v334 = vcvt.s32.f32 %v318
    %v335 = vcvt.s32.f32 %v319
    %v336 = vcvt.s32.f32 %v320
    %v337 = vcvt.s32.f32 %v321
    %v338 = vcvt.s32.f32 %v322
    %v339 = vcvt.s32.f32 %v323
    %v340 = vcvt.s32.f32 %v324
    %v341 = vcvt.s32.f32 %v325
    %v342 = vcvt.s32.f32 %v326
    %v343 = vcvt.s32.f32 %v327
    %v344 = vcvt.s32.f32 %v328
    %345 = vmatprep.subr.mxu0 0.0
    %346 = vmatpush1.msra.mxu0 %v81
    %347 = vmatprep.subr.mxu0 0.0
    %348 = vmatpush1.msra.mxu0 %v82
    %349 = vmatprep.subr.mxu0 0.0
    %350 = vmatpush1.msra.mxu0 %v83
    %351 = vmatprep.subr.mxu0 0.0
    %352 = vmatpush1.msra.mxu0 %v84
    %353 = vmatprep.subr.mxu0 0.0
    %354 = vmatpush1.msra.mxu0 %v85
    %355 = vmatprep.subr.mxu0 0.0
    %356 = vmatpush1.msra.mxu0 %v86
    %357 = vmatprep.subr.mxu0 0.0
    %358 = vmatpush1.msra.mxu0 %v87
    %359 = vmatprep.subr.mxu0 0.0
    %360 = vmatpush1.msra.mxu0 %v88
    %361 = vmatprep.subr.mxu0 0.0
    %362 = vmatpush1.msra.mxu0 %v89
    %363 = vmatprep.subr.mxu0 0.0
    %364 = vmatpush1.msra.mxu0 %v90
    %365 = vmatprep.subr.mxu0 0.0
    %366 = vmatpush1.msra.mxu0 %v91
    %367 = vmatprep.subr.mxu0 0.0
    %368 = vmatpush1.msra.mxu0 %v92
    %369 = vmatprep.subr.mxu0 0.0
    %370 = vmatpush1.msra.mxu0 %v93
    %371 = vmatprep.subr.mxu0 0.0
    %372 = vmatpush1.msra.mxu0 %v94
    %373 = vmatprep.subr.mxu0 0.0
    %374 = vmatpush1.msra.mxu0 %v95
    %375 = vmatprep.subr.mxu0 0.0
    %376 = vmatpush1.msra.mxu0 %v96
    %377 = vmatprep.subr.mxu0 0.0
    %378 = vmatpush1.msra.mxu0 0.0
    %379 = vmatprep.subr.mxu0 0.0
    %380 = vmatpush1.msra.mxu0 0.0
    %381 = vmatprep.subr.mxu0 0.0
    %382 = vmatpush1.msra.mxu0 0.0
    %383 = vmatprep.subr.mxu0 0.0
    %384 = vmatpush1.msra.mxu0 0.0
    %385 = vmatprep.subr.mxu0 0.0
    %386 = vmatpush1.msra.mxu0 0.0
    %387 = vmatprep.subr.mxu0 0.0
    %388 = vmatpush1.msra.mxu0 0.0
    %389 = vmatprep.subr.mxu0 0.0
    %390 = vmatpush1.msra.mxu0 0.0
    %391 = vmatprep.subr.mxu0 0.0
    %392 = vmatpush1.msra.mxu0 0.0
    %393 = vmatprep.subr.mxu0 0.0
    %394 = vmatpush1.msra.mxu0 0.0
    %395 = vmatprep.subr.mxu0 0.0
    %396 = vmatpush1.msra.mxu0 0.0
    %397 = vmatprep.subr.mxu0 0.0
    %398 = vmatpush1.msra.mxu0 0.0
    %399 = vmatprep.subr.mxu0 0.0
    %400 = vmatpush1.msra.mxu0 0.0
    %401 = vmatprep.subr.mxu0 0.0
    %402 = vmatpush1.msra.mxu0 0.0
    %403 = vmatprep.subr.mxu0 0.0
    %404 = vmatpush1.msra.mxu0 0.0
    %405 = vmatprep.subr.mxu0 0.0
    %406 = vmatpush1.msra.mxu0 0.0
    %407 = vmatprep.subr.mxu0 0.0
    %408 = vmatpush1.msra.mxu0 0.0
    %409 = vmatprep.mubr.f32.mxu0 0.0
    %410 = vmatmul.mubr.f32.gmra.mrb[0].mxu0 %v329
    %v411 = vpop.f32.mrb[0].mxu0
    %v412 = vadd.f32 0.0, %v411
    %v413 = vpop.f32.mrb[0].mxu0
    %414 = vmatprep.mubr.f32.mxu0 0.0
    %415 = vmatmul.mubr.f32.gmra.mrb[0].mxu0 %v330
    %v416 = vpop.f32.mrb[0].mxu0
    %v417 = vadd.f32 0.0, %v416
    %v418 = vpop.f32.mrb[0].mxu0
    %419 = vmatprep.mubr.f32.mxu0 0.0
    %420 = vmatmul.mubr.f32.gmra.mrb[0].mxu0 %v331
    %v421 = vpop.f32.mrb[0].mxu0
    %v422 = vadd.f32 0.0, %v421
    %v423 = vpop.f32.mrb[0].mxu0
    %424 = vmatprep.mubr.f32.mxu0 0.0
    %425 = vmatmul.mubr.f32.gmra.mrb[0].mxu0 %v332
    %v426 = vpop.f32.mrb[0].mxu0
    %v427 = vadd.f32 0.0, %v426
    %v428 = vpop.f32.mrb[0].mxu0
    %429 = vmatprep.mubr.f32.mxu0 0.0
    %430 = vmatmul.mubr.f32.gmra.mrb[0].mxu0 %v333
    %v431 = vpop.f32.mrb[0].mxu0
    %v432 = vadd.f32 0.0, %v431
    %v433 = vpop.f32.mrb[0].mxu0
    %434 = vmatprep.mubr.f32.mxu0 0.0
    %435 = vmatmul.mubr.f32.gmra.mrb[0].mxu0 %v334
    %v436 = vpop.f32.mrb[0].mxu0
    %v437 = vadd.f32 0.0, %v436
    %v438 = vpop.f32.mrb[0].mxu0
    %439 = vmatprep.mubr.f32.mxu0 0.0
    %440 = vmatmul.mubr.f32.gmra.mrb[0].mxu0 %v335
    %v441 = vpop.f32.mrb[0].mxu0
    %v442 = vadd.f32 0.0, %v441
    %v443 = vpop.f32.mrb[0].mxu0
    %444 = vmatprep.mubr.f32.mxu0 0.0
    %445 = vmatmul.mubr.f32.gmra.mrb[0].mxu0 %v336
    %v446 = vpop.f32.mrb[0].mxu0
    %v447 = vadd.f32 0.0, %v446
    %v448 = vpop.f32.mrb[0].mxu0
    %449 = vmatprep.mubr.f32.mxu0 0.0
    %450 = vmatmul.mubr.f32.gmra.mrb[0].mxu0 %v337
    %v451 = vpop.f32.mrb[0].mxu0
    %v452 = vadd.f32 0.0, %v451
    %v453 = vpop.f32.mrb[0].mxu0
    %454 = vmatprep.mubr.f32.mxu0 0.0
    %455 = vmatmul.mubr.f32.gmra.mrb[0].mxu0 %v338
    %v456 = vpop.f32.mrb[0].mxu0
    %v457 = vadd.f32 0.0, %v456
    %v458 = vpop.f32.mrb[0].mxu0
    %459 = vmatprep.mubr.f32.mxu0 0.0
    %460 = vmatmul.mubr.f32.gmra.mrb[0].mxu0 %v339
    %v461 = vpop.f32.mrb[0].mxu0
    %v462 = vadd.f32 0.0, %v461
    %v463 = vpop.f32.mrb[0].mxu0
    %464 = vmatprep.mubr.f32.mxu0 0.0
    %465 = vmatmul.mubr.f32.gmra.mrb[0].mxu0 %v340
    %v466 = vpop.f32.mrb[0].mxu0
    %v467 = vadd.f32 0.0, %v466
    %v468 = vpop.f32.mrb[0].mxu0
    %469 = vmatprep.mubr.f32.mxu0 0.0
    %470 = vmatmul.mubr.f32.gmra.mrb[0].mxu0 %v341
    %v471 = vpop.f32.mrb[0].mxu0
    %v472 = vadd.f32 0.0, %v471
    %v473 = vpop.f32.mrb[0].mxu0
    %474 = vmatprep.mubr.f32.mxu0 0.0
    %475 = vmatmul.mubr.f32.gmra.mrb[0].mxu0 %v342
    %v476 = vpop.f32.mrb[0].mxu0
    %v477 = vadd.f32 0.0, %v476
    %v478 = vpop.f32.mrb[0].mxu0
    %479 = vmatprep.mubr.f32.mxu0 0.0
    %480 = vmatmul.mubr.f32.gmra.mrb[0].mxu0 %v343
    %v481 = vpop.f32.mrb[0].mxu0
    %v482 = vadd.f32 0.0, %v481
    %v483 = vpop.f32.mrb[0].mxu0
    %484 = vmatprep.mubr.f32.mxu0 0.0
    %485 = vmatmul.mubr.f32.gmra.mrb[0].mxu0 %v344
    %v486 = vpop.f32.mrb[0].mxu0
    %v487 = vadd.f32 0.0, %v486
    %v488 = vpop.f32.mrb[0].mxu0
    %489 = vdwg.mxu0
    %v490 = vmul.f32 %v412, 0.000625
    %v491 = vmul.f32 %v417, 0.000625
    %v492 = vmul.f32 %v422, 0.000625
    %v493 = vmul.f32 %v427, 0.000625
    %v494 = vmul.f32 %v432, 0.000625
    %v495 = vmul.f32 %v437, 0.000625
    %v496 = vmul.f32 %v442, 0.000625
    %v497 = vmul.f32 %v447, 0.000625
    %v498 = vmul.f32 %v452, 0.000625
    %v499 = vmul.f32 %v457, 0.000625
    %v500 = vmul.f32 %v462, 0.000625
    %v501 = vmul.f32 %v467, 0.000625
    %v502 = vmul.f32 %v472, 0.000625
    %v503 = vmul.f32 %v477, 0.000625
    %v504 = vmul.f32 %v482, 0.000625
    %v505 = vmul.f32 %v487, 0.000625
    %v506 = vsub.f32 %v249, %v490
    %v507 = vsub.f32 %v250, %v491
    %v508 = vsub.f32 %v251, %v492
    %v509 = vsub.f32 %v252, %v493
    %v510 = vsub.f32 %v253, %v494
    %v511 = vsub.f32 %v254, %v495
    %v512 = vsub.f32 %v255, %v496
    %v513 = vsub.f32 %v256, %v497
    %v514 = vsub.f32 %v257, %v498
    %v515 = vsub.f32 %v258, %v499
    %v516 = vsub.f32 %v259, %v500
    %v517 = vsub.f32 %v260, %v501
    %v518 = vsub.f32 %v261, %v502
    %v519 = vsub.f32 %v262, %v503
    %v520 = vsub.f32 %v263, %v504
    %v521 = vsub.f32 %v264, %v505
    %vm522 = vcmp.gt.f32.partialorder %v506, 0.0
    %vm523 = vcmp.gt.f32.partialorder %v507, 0.0
    %vm524 = vcmp.gt.f32.partialorder %v508, 0.0
    %vm525 = vcmp.gt.f32.partialorder %v509, 0.0
    %vm526 = vcmp.gt.f32.partialorder %v510, 0.0
    %vm527 = vcmp.gt.f32.partialorder %v511, 0.0
    %vm528 = vcmp.gt.f32.partialorder %v512, 0.0
    %vm529 = vcmp.gt.f32.partialorder %v513, 0.0
    %vm530 = vcmp.gt.f32.partialorder %v514, 0.0
    %vm531 = vcmp.gt.f32.partialorder %v515, 0.0
    %vm532 = vcmp.gt.f32.partialorder %v516, 0.0
    %vm533 = vcmp.gt.f32.partialorder %v517, 0.0
    %vm534 = vcmp.gt.f32.partialorder %v518, 0.0
    %vm535 = vcmp.gt.f32.partialorder %v519, 0.0
    %vm536 = vcmp.gt.f32.partialorder %v520, 0.0
    %vm537 = vcmp.gt.f32.partialorder %v521, 0.0
    %v538 = vsel %vm522, 0.0005625, 0.0
    %v539 = vsel %vm523, 0.0005625, 0.0
    %v540 = vsel %vm524, 0.0005625, 0.0
    %v541 = vsel %vm525, 0.0005625, 0.0
    %v542 = vsel %vm526, 0.0005625, 0.0
    %v543 = vsel %vm527, 0.0005625, 0.0
    %v544 = vsel %vm528, 0.0005625, 0.0
    %v545 = vsel %vm529, 0.0005625, 0.0
    %v546 = vsel %vm530, 0.0005625, 0.0
    %v547 = vsel %vm531, 0.0005625, 0.0
    %v548 = vsel %vm532, 0.0005625, 0.0
    %v549 = vsel %vm533, 0.0005625, 0.0
    %v550 = vsel %vm534, 0.0005625, 0.0
    %v551 = vsel %vm535, 0.0005625, 0.0
    %v552 = vsel %vm536, 0.0005625, 0.0
    %v553 = vsel %vm537, 0.0005625, 0.0
    %v554 = vadd.f32 %v297, %v538
    %v555 = vadd.f32 %v298, %v539
    %v556 = vadd.f32 %v299, %v540
    %v557 = vadd.f32 %v300, %v541
    %v558 = vadd.f32 %v301, %v542
    %v559 = vadd.f32 %v302, %v543
    %v560 = vadd.f32 %v303, %v544
    %v561 = vadd.f32 %v304, %v545
    %v562 = vadd.f32 %v305, %v546
    %v563 = vadd.f32 %v306, %v547
    %v564 = vadd.f32 %v307, %v548
    %v565 = vadd.f32 %v308, %v549
    %v566 = vadd.f32 %v309, %v550
    %v567 = vadd.f32 %v310, %v551
    %v568 = vadd.f32 %v311, %v552
    %v569 = vadd.f32 %v312, %v553
    %v570 = vsel %vm522, 1, 0
    %v571 = vsel %vm523, 1, 0
    %v572 = vsel %vm524, 1, 0
    %v573 = vsel %vm525, 1, 0
    %v574 = vsel %vm526, 1, 0
    %v575 = vsel %vm527, 1, 0
    %v576 = vsel %vm528, 1, 0
    %v577 = vsel %vm529, 1, 0
    %v578 = vsel %vm530, 1, 0
    %v579 = vsel %vm531, 1, 0
    %v580 = vsel %vm532, 1, 0
    %v581 = vsel %vm533, 1, 0
    %v582 = vsel %vm534, 1, 0
    %v583 = vsel %vm535, 1, 0
    %v584 = vsel %vm536, 1, 0
    %v585 = vsel %vm537, 1, 0
    %v586 = vcvt.s32.f32 %v570
    %v587 = vcvt.s32.f32 %v571
    %v588 = vcvt.s32.f32 %v572
    %v589 = vcvt.s32.f32 %v573
    %v590 = vcvt.s32.f32 %v574
    %v591 = vcvt.s32.f32 %v575
    %v592 = vcvt.s32.f32 %v576
    %v593 = vcvt.s32.f32 %v577
    %v594 = vcvt.s32.f32 %v578
    %v595 = vcvt.s32.f32 %v579
    %v596 = vcvt.s32.f32 %v580
    %v597 = vcvt.s32.f32 %v581
    %v598 = vcvt.s32.f32 %v582
    %v599 = vcvt.s32.f32 %v583
    %v600 = vcvt.s32.f32 %v584
    %v601 = vcvt.s32.f32 %v585
    %602 = vmatprep.subr.mxu0 0.0
    %603 = vmatpush1.msra.mxu0 %v81
    %604 = vmatprep.subr.mxu0 0.0
    %605 = vmatpush1.msra.mxu0 %v82
    %606 = vmatprep.subr.mxu0 0.0
    %607 = vmatpush1.msra.mxu0 %v83
    %608 = vmatprep.subr.mxu0 0.0
    %609 = vmatpush1.msra.mxu0 %v84
    %610 = vmatprep.subr.mxu0 0.0
    %611 = vmatpush1.msra.mxu0 %v85
    %612 = vmatprep.subr.mxu0 0.0
    %613 = vmatpush1.msra.mxu0 %v86
    %614 = vmatprep.subr.mxu0 0.0
    %615 = vmatpush1.msra.mxu0 %v87
    %616 = vmatprep.subr.mxu0 0.0
    %617 = vmatpush1.msra.mxu0 %v88
    %618 = vmatprep.subr.mxu0 0.0
    %619 = vmatpush1.msra.mxu0 %v89
    %620 = vmatprep.subr.mxu0 0.0
    %621 = vmatpush1.msra.mxu0 %v90
    %622 = vmatprep.subr.mxu0 0.0
    %623 = vmatpush1.msra.mxu0 %v91
    %624 = vmatprep.subr.mxu0 0.0
    %625 = vmatpush1.msra.mxu0 %v92
    %626 = vmatprep.subr.mxu0 0.0
    %627 = vmatpush1.msra.mxu0 %v93
    %628 = vmatprep.subr.mxu0 0.0
    %629 = vmatpush1.msra.mxu0 %v94
    %630 = vmatprep.subr.mxu0 0.0
    %631 = vmatpush1.msra.mxu0 %v95
    %632 = vmatprep.subr.mxu0 0.0
    %633 = vmatpush1.msra.mxu0 %v96
    %634 = vmatprep.subr.mxu0 0.0
    %635 = vmatpush1.msra.mxu0 0.0
    %636 = vmatprep.subr.mxu0 0.0
    %637 = vmatpush1.msra.mxu0 0.0
    %638 = vmatprep.subr.mxu0 0.0
    %639 = vmatpush1.msra.mxu0 0.0
    %640 = vmatprep.subr.mxu0 0.0
    %641 = vmatpush1.msra.mxu0 0.0
    %642 = vmatprep.subr.mxu0 0.0
    %643 = vmatpush1.msra.mxu0 0.0
    %644 = vmatprep.subr.mxu0 0.0
    %645 = vmatpush1.msra.mxu0 0.0
    %646 = vmatprep.subr.mxu0 0.0
    %647 = vmatpush1.msra.mxu0 0.0
    %648 = vmatprep.subr.mxu0 0.0
    %649 = vmatpush1.msra.mxu0 0.0
    %650 = vmatprep.subr.mxu0 0.0
    %651 = vmatpush1.msra.mxu0 0.0
    %652 = vmatprep.subr.mxu0 0.0
    %653 = vmatpush1.msra.mxu0 0.0
    %654 = vmatprep.subr.mxu0 0.0
    %655 = vmatpush1.msra.mxu0 0.0
    %656 = vmatprep.subr.mxu0 0.0
    %657 = vmatpush1.msra.mxu0 0.0
    %658 = vmatprep.subr.mxu0 0.0
    %659 = vmatpush1.msra.mxu0 0.0
    %660 = vmatprep.subr.mxu0 0.0
    %661 = vmatpush1.msra.mxu0 0.0
    %662 = vmatprep.subr.mxu0 0.0
    %663 = vmatpush1.msra.mxu0 0.0
    %664 = vmatprep.subr.mxu0 0.0
    %665 = vmatpush1.msra.mxu0 0.0
    %666 = vmatprep.mubr.f32.mxu0 0.0
    %667 = vmatmul.mubr.f32.gmra.mrb[0].mxu0 %v586
    %v668 = vpop.f32.mrb[0].mxu0
    %v669 = vadd.f32 0.0, %v668
    %v670 = vpop.f32.mrb[0].mxu0
    %671 = vmatprep.mubr.f32.mxu0 0.0
    %672 = vmatmul.mubr.f32.gmra.mrb[0].mxu0 %v587
    %v673 = vpop.f32.mrb[0].mxu0
    %v674 = vadd.f32 0.0, %v673
    %v675 = vpop.f32.mrb[0].mxu0
    %676 = vmatprep.mubr.f32.mxu0 0.0
    %677 = vmatmul.mubr.f32.gmra.mrb[0].mxu0 %v588
    %v678 = vpop.f32.mrb[0].mxu0
    %v679 = vadd.f32 0.0, %v678
    %v680 = vpop.f32.mrb[0].mxu0
    %681 = vmatprep.mubr.f32.mxu0 0.0
    %682 = vmatmul.mubr.f32.gmra.mrb[0].mxu0 %v589
    %v683 = vpop.f32.mrb[0].mxu0
    %v684 = vadd.f32 0.0, %v683
    %v685 = vpop.f32.mrb[0].mxu0
    %686 = vmatprep.mubr.f32.mxu0 0.0
    %687 = vmatmul.mubr.f32.gmra.mrb[0].mxu0 %v590
    %v688 = vpop.f32.mrb[0].mxu0
    %v689 = vadd.f32 0.0, %v688
    %v690 = vpop.f32.mrb[0].mxu0
    %691 = vmatprep.mubr.f32.mxu0 0.0
    %692 = vmatmul.mubr.f32.gmra.mrb[0].mxu0 %v591
    %v693 = vpop.f32.mrb[0].mxu0
    %v694 = vadd.f32 0.0, %v693
    %v695 = vpop.f32.mrb[0].mxu0
    %696 = vmatprep.mubr.f32.mxu0 0.0
    %697 = vmatmul.mubr.f32.gmra.mrb[0].mxu0 %v592
    %v698 = vpop.f32.mrb[0].mxu0
    %v699 = vadd.f32 0.0, %v698
    %v700 = vpop.f32.mrb[0].mxu0
    %701 = vmatprep.mubr.f32.mxu0 0.0
    %702 = vmatmul.mubr.f32.gmra.mrb[0].mxu0 %v593
    %v703 = vpop.f32.mrb[0].mxu0
    %v704 = vadd.f32 0.0, %v703
    %v705 = vpop.f32.mrb[0].mxu0
    %706 = vmatprep.mubr.f32.mxu0 0.0
    %707 = vmatmul.mubr.f32.gmra.mrb[0].mxu0 %v594
    %v708 = vpop.f32.mrb[0].mxu0
    %v709 = vadd.f32 0.0, %v708
    %v710 = vpop.f32.mrb[0].mxu0
    %711 = vmatprep.mubr.f32.mxu0 0.0
    %712 = vmatmul.mubr.f32.gmra.mrb[0].mxu0 %v595
    %v713 = vpop.f32.mrb[0].mxu0
    %v714 = vadd.f32 0.0, %v713
    %v715 = vpop.f32.mrb[0].mxu0
    %716 = vmatprep.mubr.f32.mxu0 0.0
    %717 = vmatmul.mubr.f32.gmra.mrb[0].mxu0 %v596
    %v718 = vpop.f32.mrb[0].mxu0
    %v719 = vadd.f32 0.0, %v718
    %v720 = vpop.f32.mrb[0].mxu0
    %721 = vmatprep.mubr.f32.mxu0 0.0
    %722 = vmatmul.mubr.f32.gmra.mrb[0].mxu0 %v597
    %v723 = vpop.f32.mrb[0].mxu0
    %v724 = vadd.f32 0.0, %v723
    %v725 = vpop.f32.mrb[0].mxu0
    %726 = vmatprep.mubr.f32.mxu0 0.0
    %727 = vmatmul.mubr.f32.gmra.mrb[0].mxu0 %v598
    %v728 = vpop.f32.mrb[0].mxu0
    %v729 = vadd.f32 0.0, %v728
    %v730 = vpop.f32.mrb[0].mxu0
    %731 = vmatprep.mubr.f32.mxu0 0.0
    %732 = vmatmul.mubr.f32.gmra.mrb[0].mxu0 %v599
    %v733 = vpop.f32.mrb[0].mxu0
    %v734 = vadd.f32 0.0, %v733
    %v735 = vpop.f32.mrb[0].mxu0
    %736 = vmatprep.mubr.f32.mxu0 0.0
    %737 = vmatmul.mubr.f32.gmra.mrb[0].mxu0 %v600
    %v738 = vpop.f32.mrb[0].mxu0
    %v739 = vadd.f32 0.0, %v738
    %v740 = vpop.f32.mrb[0].mxu0
    %741 = vmatprep.mubr.f32.mxu0 0.0
    %742 = vmatmul.mubr.f32.gmra.mrb[0].mxu0 %v601
    %v743 = vpop.f32.mrb[0].mxu0
    %v744 = vadd.f32 0.0, %v743
    %v745 = vpop.f32.mrb[0].mxu0
    %746 = vdwg.mxu0
    %v747 = vmul.f32 %v669, 0.0005625
    %v748 = vmul.f32 %v674, 0.0005625
    %v749 = vmul.f32 %v679, 0.0005625
    %v750 = vmul.f32 %v684, 0.0005625
    %v751 = vmul.f32 %v689, 0.0005625
    %v752 = vmul.f32 %v694, 0.0005625
    %v753 = vmul.f32 %v699, 0.0005625
    %v754 = vmul.f32 %v704, 0.0005625
    %v755 = vmul.f32 %v709, 0.0005625
    %v756 = vmul.f32 %v714, 0.0005625
    %v757 = vmul.f32 %v719, 0.0005625
    %v758 = vmul.f32 %v724, 0.0005625
    %v759 = vmul.f32 %v729, 0.0005625
    %v760 = vmul.f32 %v734, 0.0005625
    %v761 = vmul.f32 %v739, 0.0005625
    %v762 = vmul.f32 %v744, 0.0005625
    %v763 = vsub.f32 %v506, %v747
    %v764 = vsub.f32 %v507, %v748
    %v765 = vsub.f32 %v508, %v749
    %v766 = vsub.f32 %v509, %v750
    %v767 = vsub.f32 %v510, %v751
    %v768 = vsub.f32 %v511, %v752
    %v769 = vsub.f32 %v512, %v753
    %v770 = vsub.f32 %v513, %v754
    %v771 = vsub.f32 %v514, %v755
    %v772 = vsub.f32 %v515, %v756
    %v773 = vsub.f32 %v516, %v757
    %v774 = vsub.f32 %v517, %v758
    %v775 = vsub.f32 %v518, %v759
    %v776 = vsub.f32 %v519, %v760
    %v777 = vsub.f32 %v520, %v761
    %v778 = vsub.f32 %v521, %v762
    %vm779 = vcmp.gt.f32.partialorder %v763, 0.0
    %vm780 = vcmp.gt.f32.partialorder %v764, 0.0
    %vm781 = vcmp.gt.f32.partialorder %v765, 0.0
    %vm782 = vcmp.gt.f32.partialorder %v766, 0.0
    %vm783 = vcmp.gt.f32.partialorder %v767, 0.0
    %vm784 = vcmp.gt.f32.partialorder %v768, 0.0
    %vm785 = vcmp.gt.f32.partialorder %v769, 0.0
    %vm786 = vcmp.gt.f32.partialorder %v770, 0.0
    %vm787 = vcmp.gt.f32.partialorder %v771, 0.0
    %vm788 = vcmp.gt.f32.partialorder %v772, 0.0
    %vm789 = vcmp.gt.f32.partialorder %v773, 0.0
    %vm790 = vcmp.gt.f32.partialorder %v774, 0.0
    %vm791 = vcmp.gt.f32.partialorder %v775, 0.0
    %vm792 = vcmp.gt.f32.partialorder %v776, 0.0
    %vm793 = vcmp.gt.f32.partialorder %v777, 0.0
    %vm794 = vcmp.gt.f32.partialorder %v778, 0.0
    %v795 = vsel %vm779, 0.00050625, 0.0
    %v796 = vsel %vm780, 0.00050625, 0.0
    %v797 = vsel %vm781, 0.00050625, 0.0
    %v798 = vsel %vm782, 0.00050625, 0.0
    %v799 = vsel %vm783, 0.00050625, 0.0
    %v800 = vsel %vm784, 0.00050625, 0.0
    %v801 = vsel %vm785, 0.00050625, 0.0
    %v802 = vsel %vm786, 0.00050625, 0.0
    %v803 = vsel %vm787, 0.00050625, 0.0
    %v804 = vsel %vm788, 0.00050625, 0.0
    %v805 = vsel %vm789, 0.00050625, 0.0
    %v806 = vsel %vm790, 0.00050625, 0.0
    %v807 = vsel %vm791, 0.00050625, 0.0
    %v808 = vsel %vm792, 0.00050625, 0.0
    %v809 = vsel %vm793, 0.00050625, 0.0
    %v810 = vsel %vm794, 0.00050625, 0.0
    %v811 = vadd.f32 %v554, %v795
    %v812 = vadd.f32 %v555, %v796
    %v813 = vadd.f32 %v556, %v797
    %v814 = vadd.f32 %v557, %v798
    %v815 = vadd.f32 %v558, %v799
    %v816 = vadd.f32 %v559, %v800
    %v817 = vadd.f32 %v560, %v801
    %v818 = vadd.f32 %v561, %v802
    %v819 = vadd.f32 %v562, %v803
    %v820 = vadd.f32 %v563, %v804
    %v821 = vadd.f32 %v564, %v805
    %v822 = vadd.f32 %v565, %v806
    %v823 = vadd.f32 %v566, %v807
    %v824 = vadd.f32 %v567, %v808
    %v825 = vadd.f32 %v568, %v809
    %v826 = vadd.f32 %v569, %v810
    %v827 = vld [vmem:[%s1] sm:$0xff]
    %v828 = vld [vmem:[%s1 + $0x8] sm:$0xff]
    %v829 = vld [vmem:[%s1 + $0x10] sm:$0xff]
    %v830 = vld [vmem:[%s1 + $0x18] sm:$0xff]
    %v831 = vld [vmem:[%s1 + $0x20] sm:$0xff]
    %v832 = vld [vmem:[%s1 + $0x28] sm:$0xff]
    %v833 = vld [vmem:[%s1 + $0x30] sm:$0xff]
    %v834 = vld [vmem:[%s1 + $0x38] sm:$0xff]
    %v835 = vld [vmem:[%s1 + $0x40] sm:$0xff]
    %v836 = vld [vmem:[%s1 + $0x48] sm:$0xff]
    %v837 = vld [vmem:[%s1 + $0x50] sm:$0xff]
    %v838 = vld [vmem:[%s1 + $0x58] sm:$0xff]
    %v839 = vld [vmem:[%s1 + $0x60] sm:$0xff]
    %v840 = vld [vmem:[%s1 + $0x68] sm:$0xff]
    %v841 = vld [vmem:[%s1 + $0x70] sm:$0xff]
    %v842 = vld [vmem:[%s1 + $0x78] sm:$0xff]
    %843 = vmatprep.subr.mxu0 0.0
    %844 = vmatpush1.msra.mxu0 %v827
    %845 = vmatprep.subr.mxu0 0.0
    %846 = vmatpush1.msra.mxu0 %v828
    %847 = vmatprep.subr.mxu0 0.0
    %848 = vmatpush1.msra.mxu0 %v829
    %849 = vmatprep.subr.mxu0 0.0
    %850 = vmatpush1.msra.mxu0 %v830
    %851 = vmatprep.subr.mxu0 0.0
    %852 = vmatpush1.msra.mxu0 %v831
    %853 = vmatprep.subr.mxu0 0.0
    %854 = vmatpush1.msra.mxu0 %v832
    %855 = vmatprep.subr.mxu0 0.0
    %856 = vmatpush1.msra.mxu0 %v833
    %857 = vmatprep.subr.mxu0 0.0
    %858 = vmatpush1.msra.mxu0 %v834
    %859 = vmatprep.subr.mxu0 0.0
    %860 = vmatpush1.msra.mxu0 %v835
    %861 = vmatprep.subr.mxu0 0.0
    %862 = vmatpush1.msra.mxu0 %v836
    %863 = vmatprep.subr.mxu0 0.0
    %864 = vmatpush1.msra.mxu0 %v837
    %865 = vmatprep.subr.mxu0 0.0
    %866 = vmatpush1.msra.mxu0 %v838
    %867 = vmatprep.subr.mxu0 0.0
    %868 = vmatpush1.msra.mxu0 %v839
    %869 = vmatprep.subr.mxu0 0.0
    %870 = vmatpush1.msra.mxu0 %v840
    %871 = vmatprep.subr.mxu0 0.0
    %872 = vmatpush1.msra.mxu0 %v841
    %873 = vmatprep.subr.mxu0 0.0
    %874 = vmatpush1.msra.mxu0 %v842
    %875 = vmatprep.subr.mxu0 0.0
    %876 = vmatpush1.msra.mxu0 0.0
    %877 = vmatprep.subr.mxu0 0.0
    %878 = vmatpush1.msra.mxu0 0.0
    %879 = vmatprep.subr.mxu0 0.0
    %880 = vmatpush1.msra.mxu0 0.0
    %881 = vmatprep.subr.mxu0 0.0
    %882 = vmatpush1.msra.mxu0 0.0
    %883 = vmatprep.subr.mxu0 0.0
    %884 = vmatpush1.msra.mxu0 0.0
    %885 = vmatprep.subr.mxu0 0.0
    %886 = vmatpush1.msra.mxu0 0.0
    %887 = vmatprep.subr.mxu0 0.0
    %888 = vmatpush1.msra.mxu0 0.0
    %889 = vmatprep.subr.mxu0 0.0
    %890 = vmatpush1.msra.mxu0 0.0
    %891 = vmatprep.subr.mxu0 0.0
    %892 = vmatpush1.msra.mxu0 0.0
    %893 = vmatprep.subr.mxu0 0.0
    %894 = vmatpush1.msra.mxu0 0.0
    %895 = vmatprep.subr.mxu0 0.0
    %896 = vmatpush1.msra.mxu0 0.0
    %897 = vmatprep.subr.mxu0 0.0
    %898 = vmatpush1.msra.mxu0 0.0
    %899 = vmatprep.subr.mxu0 0.0
    %900 = vmatpush1.msra.mxu0 0.0
    %901 = vmatprep.subr.mxu0 0.0
    %902 = vmatpush1.msra.mxu0 0.0
    %903 = vmatprep.subr.mxu0 0.0
    %904 = vmatpush1.msra.mxu0 0.0
    %905 = vmatprep.subr.mxu0 0.0
    %906 = vmatpush1.msra.mxu0 0.0
    %907 = vmatprep.mubr.f32.mxu0 0.0
    %908 = vmatmul.mubr.f32.gmra.mrb[0].mxu0 %v811
    %v909 = vpop.f32.mrb[0].mxu0
    %v910 = vadd.f32 0.0, %v909
    %v911 = vpop.f32.mrb[0].mxu0
    %912 = vmatprep.mubr.f32.mxu0 0.0
    %913 = vmatmul.mubr.f32.gmra.mrb[0].mxu0 %v812
    %v914 = vpop.f32.mrb[0].mxu0
    %v915 = vadd.f32 0.0, %v914
    %v916 = vpop.f32.mrb[0].mxu0
    %917 = vmatprep.mubr.f32.mxu0 0.0
    %918 = vmatmul.mubr.f32.gmra.mrb[0].mxu0 %v813
    %v919 = vpop.f32.mrb[0].mxu0
    %v920 = vadd.f32 0.0, %v919
    %v921 = vpop.f32.mrb[0].mxu0
    %922 = vmatprep.mubr.f32.mxu0 0.0
    %923 = vmatmul.mubr.f32.gmra.mrb[0].mxu0 %v814
    %v924 = vpop.f32.mrb[0].mxu0
    %v925 = vadd.f32 0.0, %v924
    %v926 = vpop.f32.mrb[0].mxu0
    %927 = vmatprep.mubr.f32.mxu0 0.0
    %928 = vmatmul.mubr.f32.gmra.mrb[0].mxu0 %v815
    %v929 = vpop.f32.mrb[0].mxu0
    %v930 = vadd.f32 0.0, %v929
    %v931 = vpop.f32.mrb[0].mxu0
    %932 = vmatprep.mubr.f32.mxu0 0.0
    %933 = vmatmul.mubr.f32.gmra.mrb[0].mxu0 %v816
    %v934 = vpop.f32.mrb[0].mxu0
    %v935 = vadd.f32 0.0, %v934
    %v936 = vpop.f32.mrb[0].mxu0
    %937 = vmatprep.mubr.f32.mxu0 0.0
    %938 = vmatmul.mubr.f32.gmra.mrb[0].mxu0 %v817
    %v939 = vpop.f32.mrb[0].mxu0
    %v940 = vadd.f32 0.0, %v939
    %v941 = vpop.f32.mrb[0].mxu0
    %942 = vmatprep.mubr.f32.mxu0 0.0
    %943 = vmatmul.mubr.f32.gmra.mrb[0].mxu0 %v818
    %v944 = vpop.f32.mrb[0].mxu0
    %v945 = vadd.f32 0.0, %v944
    %v946 = vpop.f32.mrb[0].mxu0
    %947 = vmatprep.mubr.f32.mxu0 0.0
    %948 = vmatmul.mubr.f32.gmra.mrb[0].mxu0 %v819
    %v949 = vpop.f32.mrb[0].mxu0
    %v950 = vadd.f32 0.0, %v949
    %v951 = vpop.f32.mrb[0].mxu0
    %952 = vmatprep.mubr.f32.mxu0 0.0
    %953 = vmatmul.mubr.f32.gmra.mrb[0].mxu0 %v820
    %v954 = vpop.f32.mrb[0].mxu0
    %v955 = vadd.f32 0.0, %v954
    %v956 = vpop.f32.mrb[0].mxu0
    %957 = vmatprep.mubr.f32.mxu0 0.0
    %958 = vmatmul.mubr.f32.gmra.mrb[0].mxu0 %v821
    %v959 = vpop.f32.mrb[0].mxu0
    %v960 = vadd.f32 0.0, %v959
    %v961 = vpop.f32.mrb[0].mxu0
    %962 = vmatprep.mubr.f32.mxu0 0.0
    %963 = vmatmul.mubr.f32.gmra.mrb[0].mxu0 %v822
    %v964 = vpop.f32.mrb[0].mxu0
    %v965 = vadd.f32 0.0, %v964
    %v966 = vpop.f32.mrb[0].mxu0
    %967 = vmatprep.mubr.f32.mxu0 0.0
    %968 = vmatmul.mubr.f32.gmra.mrb[0].mxu0 %v823
    %v969 = vpop.f32.mrb[0].mxu0
    %v970 = vadd.f32 0.0, %v969
    %v971 = vpop.f32.mrb[0].mxu0
    %972 = vmatprep.mubr.f32.mxu0 0.0
    %973 = vmatmul.mubr.f32.gmra.mrb[0].mxu0 %v824
    %v974 = vpop.f32.mrb[0].mxu0
    %v975 = vadd.f32 0.0, %v974
    %v976 = vpop.f32.mrb[0].mxu0
    %977 = vmatprep.mubr.f32.mxu0 0.0
    %978 = vmatmul.mubr.f32.gmra.mrb[0].mxu0 %v825
    %v979 = vpop.f32.mrb[0].mxu0
    %v980 = vadd.f32 0.0, %v979
    %v981 = vpop.f32.mrb[0].mxu0
    %982 = vmatprep.mubr.f32.mxu0 0.0
    %983 = vmatmul.mubr.f32.gmra.mrb[0].mxu0 %v826
    %v984 = vpop.f32.mrb[0].mxu0
    %v985 = vadd.f32 0.0, %v984
    %v986 = vpop.f32.mrb[0].mxu0
    %987 = vdwg.mxu0
    %v988 = vsub.f32 %v49, %v910
    %v989 = vsub.f32 %v50, %v915
    %v990 = vsub.f32 %v51, %v920
    %v991 = vsub.f32 %v52, %v925
    %v992 = vsub.f32 %v53, %v930
    %v993 = vsub.f32 %v54, %v935
    %v994 = vsub.f32 %v55, %v940
    %v995 = vsub.f32 %v56, %v945
    %v996 = vsub.f32 %v57, %v950
    %v997 = vsub.f32 %v58, %v955
    %v998 = vsub.f32 %v59, %v960
    %v999 = vsub.f32 %v60, %v965
    %v1000 = vsub.f32 %v61, %v970
    %v1001 = vsub.f32 %v62, %v975
    %v1002 = vsub.f32 %v63, %v980
    %v1003 = vsub.f32 %v64, %v985
    %1004 = vst [vmem:[#allocation7] sm:$0xff] %v988
    %1005 = vst [vmem:[#allocation7 + $0x8] sm:$0xff] %v989
    %1006 = vst [vmem:[#allocation7 + $0x10] sm:$0xff] %v990
    %1007 = vst [vmem:[#allocation7 + $0x18] sm:$0xff] %v991
    %1008 = vst [vmem:[#allocation7 + $0x20] sm:$0xff] %v992
    %1009 = vst [vmem:[#allocation7 + $0x28] sm:$0xff] %v993
    %1010 = vst [vmem:[#allocation7 + $0x30] sm:$0xff] %v994
    %1011 = vst [vmem:[#allocation7 + $0x38] sm:$0xff] %v995
    %1012 = vst [vmem:[#allocation7 + $0x40] sm:$0xff] %v996
    %1013 = vst [vmem:[#allocation7 + $0x48] sm:$0xff] %v997
    %1014 = vst [vmem:[#allocation7 + $0x50] sm:$0xff] %v998
    %1015 = vst [vmem:[#allocation7 + $0x58] sm:$0xff] %v999
    %1016 = vst [vmem:[#allocation7 + $0x60] sm:$0xff] %v1000
    %1017 = vst [vmem:[#allocation7 + $0x68] sm:$0xff] %v1001
    %1018 = vst [vmem:[#allocation7 + $0x70] sm:$0xff] %v1002
    %1019 = vst [vmem:[#allocation7 + $0x78] sm:$0xff] %v1003
    // Predicated region
    $region30: #{tpu_custom_call.1} parent=1 // pred_check
      _
    $region31: #{tpu_custom_call.1} parent=1 // pred_check_branch
      %1021 = sbr.rel (0) target = $region33
    $region32: #{tpu_custom_call.1} parent=1 // pred_region
      %s1023 = ssub.s32 2048, 2048
      %1024 = vsyncadd [#allocation4], %s1023
      %s1025 = sshll.u32 [#allocation7], 4
      %s1026 = int_to_ptr.vmem [resolvable:$true] %s1025
      %1031 = dma.vmem_to_hbm [thread:$0]  %s1026, 2048, %s5, [#allocation4], 128, 128, 8
    $region33: #{tpu_custom_call.1} parent=1 // pred_fallthru
      _
    // Predicated region
    $region34: #{tpu_custom_call.1} parent=1 // pred_check
      _
    $region35: #{tpu_custom_call.1} parent=1 // pred_check_branch
      %1033 = sbr.rel (0) target = $region37
    $region36: #{tpu_custom_call.1} parent=1 // pred_region
      %1034 = dma.done [#allocation4], 2048
    $region37: #{tpu_custom_call.1} parent=1 // pred_fallthru
      _
    %1035 = vsyncpa [#allocation3], 1
    %1036 = vsyncpa [#allocation6], 1
    %1037 = vsyncpa [#allocation4], 1

</llo_original>
